<compile_context>
chip_gen: v5e
topology: v5e:2x2
jax: 0.10.0
libtpu: 0.0.40
codegen_flags: <defaults>
</compile_context>

<pallas_src>
import functools

import numpy as np
import jax
import jax.numpy as jnp
from jax.experimental import pallas as pl
from jax.experimental.pallas import tpu as pltpu


# ----------------------------------------------------------------------------
# Kernel 1: embedding Linear + positional encoding (runs once, outside the
# layer grid so its operands never stay resident during the decoder layers).
# ----------------------------------------------------------------------------
def _embed_kernel(trg_ref, w_ref, b_ref, pos_ref, x0_ref, *, B, S, d_model):
    x = jnp.dot(trg_ref[...], w_ref[...], preferred_element_type=jnp.float32)
    x = x + b_ref[...]                                    # (B*S, d_model)
    x = x.reshape(B, S, d_model) + pos_ref[...]           # broadcast pos over batch
    x0_ref[...] = x.reshape(B * S, d_model)
    # dropout -> identity (eval)


# ----------------------------------------------------------------------------
# Kernel 2: fused decoder stack. One grid step == one DecoderLayer on one
# batch tile; the activation lives in out_ref (VMEM-resident across the layer
# axis, since its block index is constant along it).
# ----------------------------------------------------------------------------
def _decoder_layer_kernel(
    x0_ref, enc_ref,
    wq_ref, wk_ref, wv_ref, wo_ref,        # self-attention per-head weight stacks
    ewq_ref, ewk_ref, ewv_ref, ewo_ref,    # cross ("enc") attention stacks
    w1_ref, b1_ref, w2_ref, vec_ref,       # FFN weights + packed LN/bias slab
    out_ref,                               # VMEM-resident activation carrier
    *, TB, S, H, d_k, d_v, d_model, d_inner):
    l = pl.program_id(1)

    # layer 0: seed the resident activation with the embedded input tile
    @pl.when(l == 0)
    def _():
        out_ref[...] = x0_ref[...]

    R = TB * S
    temp_inv = 1.0 / float(d_k) ** 0.5
    eps = 1e-6
    neg = jnp.float32(-1.0e9)

    # hard-coded upper-triangular mask (applied to BOTH attentions, matching
    # the PyTorch ScaledDotProductAttention)
    row = jax.lax.broadcasted_iota(jnp.int32, (S, S), 0)
    col = jax.lax.broadcasted_iota(jnp.int32, (S, S), 1)
    causal = (col > row)[None]              # (1, S, S)

    vec = vec_ref[...]                      # (8, d_model) packed LN gains/biases

    def layer_norm(x, g_row, b_row):
        g = vec[g_row:g_row + 1, :]
        b = vec[b_row:b_row + 1, :]
        mu = jnp.mean(x, axis=-1, keepdims=True)
        var = jnp.mean((x - mu) * (x - mu), axis=-1, keepdims=True)
        return (x - mu) * jax.lax.rsqrt(var + eps) * g + b

    def mha(q_src_bf16, kv_src_bf16, wq, wk, wv, wo):
        # Per-head weight stacks avoid non-128-aligned lane slices of a fused
        # QKV matmul output; summing per-head output projections avoids the
        # lane-axis head concatenation.  Only 2-D matmuls / single-batch-dim
        # 3-D einsums are used.
        acc = None
        for h in range(H):                  # H is small and static
            q = jnp.dot(q_src_bf16, wq[h], preferred_element_type=jnp.float32)
            k = jnp.dot(kv_src_bf16, wk[h], preferred_element_type=jnp.float32)
            v = jnp.dot(kv_src_bf16, wv[h], preferred_element_type=jnp.float32)
            q3 = (q * temp_inv).reshape(TB, S, d_k).astype(jnp.bfloat16)
            k3 = k.reshape(TB, S, d_k).astype(jnp.bfloat16)
            v3 = v.reshape(TB, S, d_v).astype(jnp.bfloat16)
            s = jnp.einsum('bqd,bkd->bqk', q3, k3,
                           preferred_element_type=jnp.float32)      # (TB, S, S)
            s = jnp.where(causal, neg, s)
            s = s - jnp.max(s, axis=-1, keepdims=True)
            p = jnp.exp(s)
            p = p * pl.reciprocal(jnp.sum(p, axis=-1, keepdims=True), approx=True)
            o = jnp.einsum('bqk,bkd->bqd', p.astype(jnp.bfloat16), v3,
                           preferred_element_type=jnp.float32)      # (TB, S, d_v)
            contrib = jnp.dot(o.reshape(R, d_v).astype(jnp.bfloat16), wo[h],
                              preferred_element_type=jnp.float32)   # (R, d_model)
            acc = contrib if acc is None else acc + contrib
        return acc
        # TODO(synk): for long S convert to a key-block online-softmax
        #             (flash-style) loop instead of the full (TB,S,S) scores.

    x = out_ref[...]                        # (R, d_model) f32, VMEM-resident

    # ---- causal self-attention sublayer -------------------------------------
    residual = x
    x_bf = x.astype(jnp.bfloat16)
    a = mha(x_bf, x_bf, wq_ref, wk_ref, wv_ref, wo_ref)
    x = layer_norm(a + residual, 0, 1)

    # ---- cross attention over enc_output (still with the hard-coded mask) ---
    residual = x
    a = mha(x.astype(jnp.bfloat16), enc_ref[...],
            ewq_ref, ewk_ref, ewv_ref, ewo_ref)
    x = layer_norm(a + residual, 2, 3)

    # ---- position-wise FFN (intermediate never leaves VMEM; bf16 after ReLU)
    residual = x
    h1 = jnp.dot(x.astype(jnp.bfloat16), w1_ref[...],
                 preferred_element_type=jnp.float32) + b1_ref[...]
    h1 = jnp.maximum(h1, 0.0).astype(jnp.bfloat16)
    y = jnp.dot(h1, w2_ref[...], preferred_element_type=jnp.float32) + vec[4:5, :]
    x = layer_norm(y + residual, 5, 6)

    out_ref[...] = x                        # stays resident for the next layer


# ----------------------------------------------------------------------------
# Wrapper: weight stacking + two pallas_calls
# ----------------------------------------------------------------------------
@functools.partial(jax.jit, static_argnames=("n_heads", "d_k", "d_v", "batch_tile"))
def decoder_forward(params, trg_seq, enc_output, *, n_heads, d_k, d_v, batch_tile=1):
    B, S, F = trg_seq.shape
    d_model = params["emb_w"].shape[1]
    d_inner = params["layers"][0]["ffn"]["w1"].shape[1]
    L = len(params["layers"])
    H = n_heads
    tb = batch_tile if batch_tile is not None else B
    assert B % tb == 0, "batch must be divisible by batch_tile"
    R = tb * S

    # ---- stage 1: embedding + positional encoding ---------------------------
    trg2d = trg_seq.reshape(B * S, F).astype(jnp.float32)
    emb_w = params["emb_w"].astype(jnp.float32)
    emb_b = params["emb_b"].reshape(1, d_model).astype(jnp.float32)
    pos = params["pos_table"][:S].astype(jnp.float32)            # (S, d_model)
    x0 = pl.pallas_call(
        functools.partial(_embed_kernel, B=B, S=S, d_model=d_model),
        out_shape=jax.ShapeDtypeStruct((B * S, d_model), jnp.float32),
    )(trg2d, emb_w, emb_b, pos)

    enc2d = enc_output.reshape(B * S, d_model).astype(jnp.bfloat16)

    # ---- stage 2: weight stacking (per-head layout + packed LN/bias slab) ---
    layers = params["layers"]

    def split_in(w, dh):     # (d_model, H*dh) -> (H, d_model, dh)
        return w.reshape(d_model, H, dh).transpose(1, 0, 2)

    def split_out(w, dh):    # (H*dh, d_model) -> (H, dh, d_model)
        return w.reshape(H, dh, d_model)

    def stack(fn, dtype=jnp.bfloat16):
        return jnp.stack([fn(lp) for lp in layers]).astype(dtype)

    wq = stack(lambda lp: split_in(lp["slf"]["w_qs"], d_k))
    wk = stack(lambda lp: split_in(lp["slf"]["w_ks"], d_k))
    wv = stack(lambda lp: split_in(lp["slf"]["w_vs"], d_v))
    wo = stack(lambda lp: split_out(lp["slf"]["fc"], d_v))
    ewq = stack(lambda lp: split_in(lp["enc"]["w_qs"], d_k))
    ewk = stack(lambda lp: split_in(lp["enc"]["w_ks"], d_k))
    ewv = stack(lambda lp: split_in(lp["enc"]["w_vs"], d_v))
    ewo = stack(lambda lp: split_out(lp["enc"]["fc"], d_v))
    w1 = stack(lambda lp: lp["ffn"]["w1"])
    w2 = stack(lambda lp: lp["ffn"]["w2"])
    b1 = stack(lambda lp: lp["ffn"]["b1"].reshape(1, d_inner), jnp.float32)
    vecs = stack(lambda lp: jnp.stack([
        lp["slf"]["ln_g"], lp["slf"]["ln_b"],
        lp["enc"]["ln_g"], lp["enc"]["ln_b"],
        lp["ffn"]["b2"], lp["ffn"]["ln_g"], lp["ffn"]["ln_b"],
        jnp.zeros((d_model,), jnp.float32)]), jnp.float32)        # (L, 8, d_model)

    # ---- stage 3: fused decoder stack ---------------------------------------
    def const_bt():
        return pl.BlockSpec((R, d_model), lambda b, l: (b, 0))

    def per_layer(*dims):
        return pl.BlockSpec((None,) + dims,
                            lambda b, l, _n=len(dims): (l,) + (0,) * _n)

    kernel = functools.partial(_decoder_layer_kernel, TB=tb, S=S, H=H,
                               d_k=d_k, d_v=d_v, d_model=d_model, d_inner=d_inner)

    # Explicit VMEM budget: double-buffered per-layer weights + resident
    # activation/enc/x0 blocks + the largest in-flight intermediates.
    per_layer_w = sum(int(a.size * a.dtype.itemsize) // L
                      for a in (wq, wk, wv, wo, ewq, ewk, ewv, ewo,
                                w1, w2, b1, vecs))
    vmem_est = (2 * per_layer_w
                + 2 * R * d_model * (4 + 2 + 4)   # x0(f32) + enc(bf16) + out(f32)
                + R * d_inner * (4 + 2)           # FFN hidden (f32 + bf16 copy)
                + 3 * tb * S * S * 4              # score/prob working set
                + 8 * R * d_model * 4)            # misc f32 temporaries
    vmem_limit = int(min(max(2 * vmem_est, 16 << 20), 96 << 20))

    grid_spec = pltpu.PrefetchScalarGridSpec(
        num_scalar_prefetch=0,
        grid=(B // tb, L),                  # (parallel batch tiles, sequential layers)
        in_specs=[
            const_bt(),                         # x0 (seed activation)
            const_bt(),                         # enc_output
            per_layer(H, d_model, d_k),         # self  Wq
            per_layer(H, d_model, d_k),         # self  Wk
            per_layer(H, d_model, d_v),         # self  Wv
            per_layer(H, d_v, d_model),         # self  Wo (fc)
            per_layer(H, d_model, d_k),         # cross Wq
            per_layer(H, d_model, d_k),         # cross Wk
            per_layer(H, d_model, d_v),         # cross Wv
            per_layer(H, d_v, d_model),         # cross Wo (fc)
            per_layer(d_model, d_inner),        # ffn W1
            per_layer(1, d_inner),              # ffn b1
            per_layer(d_inner, d_model),        # ffn W2
            per_layer(8, d_model),              # packed LN gains/biases + ffn b2
        ],
        out_specs=pl.BlockSpec((R, d_model), lambda b, l: (b, 0)),
    )

    out2d = pl.pallas_call(
        kernel,
        out_shape=jax.ShapeDtypeStruct((B * S, d_model), jnp.float32),
        grid_spec=grid_spec,
        compiler_params=pltpu.CompilerParams(
            dimension_semantics=("parallel", "arbitrary"),
            vmem_limit_bytes=vmem_limit),
    )(x0, enc2d, wq, wk, wv, wo, ewq, ewk, ewv, ewo, w1, b1, w2, vecs)

    return out2d.reshape(B, S, d_model)


# ----------------------------------------------------------------------------
# Deterministic parameter construction
# ----------------------------------------------------------------------------
def sinusoid_table(n_position, d_hid):
    pos = np.arange(n_position)[:, None].astype(np.float64)
    hid = np.arange(d_hid)[None, :]
    angle = pos / np.power(10000.0, 2.0 * (hid // 2) / d_hid)
    table = np.zeros((n_position, d_hid))
    table[:, 0::2] = np.sin(angle[:, 0::2])
    table[:, 1::2] = np.cos(angle[:, 1::2])
    return jnp.asarray(table, jnp.float32)


def init_params(key, n_layers, n_steps, n_features, d_model, d_inner, n_heads, d_k, d_v):
    def dense(key, fan_in, fan_out):
        return 0.02 * jax.random.normal(key, (fan_in, fan_out), jnp.float32)

    keys = jax.random.split(key, 2 + n_layers)
    params = {
        "emb_w": dense(keys[0], n_features, d_model),
        "emb_b": jnp.zeros((d_model,), jnp.float32),
        "pos_table": sinusoid_table(n_steps, d_model),
        "layers": [],
    }
    for li in range(n_layers):
        lk = jax.random.split(keys[2 + li], 10)

        def mha(ks):
            return {
                "w_qs": dense(ks[0], d_model, n_heads * d_k),
                "w_ks": dense(ks[1], d_model, n_heads * d_k),
                "w_vs": dense(ks[2], d_model, n_heads * d_v),
                "fc":   dense(ks[3], n_heads * d_v, d_model),
                "ln_g": jnp.ones((d_model,), jnp.float32),
                "ln_b": jnp.zeros((d_model,), jnp.float32),
            }

        params["layers"].append({
            "slf": mha(lk[0:4]),
            "enc": mha(lk[4:8]),
            "ffn": {
                "w1": dense(lk[8], d_model, d_inner),
                "b1": jnp.zeros((d_inner,), jnp.float32),
                "w2": dense(lk[9], d_inner, d_model),
                "b2": jnp.zeros((d_model,), jnp.float32),
                "ln_g": jnp.ones((d_model,), jnp.float32),
                "ln_b": jnp.zeros((d_model,), jnp.float32),
            },
        })
    return params


# ----------------------------------------------------------------------------
# Main
# ----------------------------------------------------------------------------
if __name__ == "__main__":
    n_layers, n_steps, n_features = 2, 8, 5
    d_model, d_inner, n_heads, d_k, d_v = 32, 64, 2, 16, 16
    batch = 2

    key = jax.random.PRNGKey(0)
    k_param, k_trg, k_enc = jax.random.split(key, 3)

    params = init_params(k_param, n_layers, n_steps, n_features,
                         d_model, d_inner, n_heads, d_k, d_v)

    trg_seq = jax.random.normal(k_trg, (batch, n_steps, n_features), jnp.float32)
    enc_output = jax.random.normal(k_enc, (batch, n_steps, d_model), jnp.float32)

    out = decoder_forward(params, trg_seq, enc_output,
                          n_heads=n_heads, d_k=d_k, d_v=d_v, batch_tile=1)
    out = jax.block_until_ready(out)

    assert out.shape == (batch, n_steps, d_model)
    assert bool(jnp.all(jnp.isfinite(out)))
    print("KERNEL_OK")
</pallas_src>

<mosaic_0001>
module attributes {stable_mosaic.version = 11 : i64} {
  func.func @_embed_kernel(%arg0: memref<16x5xf32, #tpu.memory_space<vmem>>, %arg1: memref<5x32xf32, #tpu.memory_space<vmem>>, %arg2: memref<1x32xf32, #tpu.memory_space<vmem>>, %arg3: memref<8x32xf32, #tpu.memory_space<vmem>>, %arg4: memref<16x32xf32, #tpu.memory_space<vmem>>) attributes {dimension_semantics = [], scalar_prefetch = 0 : i64, scratch_operands = 0 : i64, tpu.core_type = #tpu.core_type<tc>} {
    %c0 = arith.constant 0 : index
    %c0_0 = arith.constant 0 : index
    %0 = vector.load %arg0[%c0, %c0_0] : memref<16x5xf32, #tpu.memory_space<vmem>>, vector<16x5xf32>
    %c0_1 = arith.constant 0 : index
    %c0_2 = arith.constant 0 : index
    %1 = vector.load %arg1[%c0_1, %c0_2] : memref<5x32xf32, #tpu.memory_space<vmem>>, vector<5x32xf32>
    %cst = arith.constant dense<0.000000e+00> : vector<16x32xf32>
    %2 = tpu.matmul %0, %1, %cst {dimension_numbers = #tpu.dot_dimension_numbers<[1], [0], [0], [1], [0, 0, 1, 1], [], []>} : vector<16x5xf32>, vector<5x32xf32>, vector<16x32xf32> -> vector<16x32xf32>
    %c0_3 = arith.constant 0 : index
    %c0_4 = arith.constant 0 : index
    %3 = vector.load %arg2[%c0_3, %c0_4] : memref<1x32xf32, #tpu.memory_space<vmem>>, vector<1x32xf32>
    %4 = vector.broadcast %3 : vector<1x32xf32> to vector<16x32xf32>
    %5 = arith.addf %2, %4 : vector<16x32xf32>
    %6 = vector.shape_cast %5 : vector<16x32xf32> to vector<2x8x32xf32>
    %c0_5 = arith.constant 0 : index
    %c0_6 = arith.constant 0 : index
    %7 = vector.load %arg3[%c0_5, %c0_6] : memref<8x32xf32, #tpu.memory_space<vmem>>, vector<8x32xf32>
    %8 = vector.shape_cast %7 : vector<8x32xf32> to vector<1x8x32xf32>
    %9 = vector.broadcast %8 : vector<1x8x32xf32> to vector<2x8x32xf32>
    %10 = arith.addf %6, %9 : vector<2x8x32xf32>
    %11 = vector.shape_cast %10 : vector<2x8x32xf32> to vector<16x32xf32>
    %c0_7 = arith.constant 0 : index
    %c0_8 = arith.constant 0 : index
    %12 = vector.load %arg4[%c0_7, %c0_8] : memref<16x32xf32, #tpu.memory_space<vmem>>, vector<16x32xf32>
    tpu.vector_store %arg4[%c0_7, %c0_8], %11 {strides = array<i32>} : memref<16x32xf32, #tpu.memory_space<vmem>>, vector<16x32xf32>,
    return
  }
}

module attributes {stable_mosaic.version = 11 : i64} {
  func.func @_decoder_layer_kernel(%arg0: i32, %arg1: i32, %arg2: memref<8x32xf32, #tpu.memory_space<vmem>>, %arg3: memref<8x32xbf16, #tpu.memory_space<vmem>>, %arg4: memref<1x2x32x16xbf16, #tpu.memory_space<vmem>>, %arg5: memref<1x2x32x16xbf16, #tpu.memory_space<vmem>>, %arg6: memref<1x2x32x16xbf16, #tpu.memory_space<vmem>>, %arg7: memref<1x2x16x32xbf16, #tpu.memory_space<vmem>>, %arg8: memref<1x2x32x16xbf16, #tpu.memory_space<vmem>>, %arg9: memref<1x2x32x16xbf16, #tpu.memory_space<vmem>>, %arg10: memref<1x2x32x16xbf16, #tpu.memory_space<vmem>>, %arg11: memref<1x2x16x32xbf16, #tpu.memory_space<vmem>>, %arg12: memref<1x32x64xbf16, #tpu.memory_space<vmem>>, %arg13: memref<1x1x64xf32, #tpu.memory_space<vmem>>, %arg14: memref<1x64x32xbf16, #tpu.memory_space<vmem>>, %arg15: memref<1x8x32xf32, #tpu.memory_space<vmem>>, %arg16: memref<8x32xf32, #tpu.memory_space<vmem>>) attributes {dimension_semantics = [#tpu.dimension_semantics<parallel>, #tpu.dimension_semantics<arbitrary>], iteration_bounds = array<i64: 2, 2>, scalar_prefetch = 0 : i64, scratch_operands = 0 : i64, tpu.core_type = #tpu.core_type<tc>, window_params = [{transform_indices = @transform_0, window_bounds = array<i64: 8, 32>}, {transform_indices = @transform_1, window_bounds = array<i64: 8, 32>}, {transform_indices = @transform_2, window_bounds = array<i64: 1, 2, 32, 16>}, {transform_indices = @transform_3, window_bounds = array<i64: 1, 2, 32, 16>}, {transform_indices = @transform_4, window_bounds = array<i64: 1, 2, 32, 16>}, {transform_indices = @transform_5, window_bounds = array<i64: 1, 2, 16, 32>}, {transform_indices = @transform_6, window_bounds = array<i64: 1, 2, 32, 16>}, {transform_indices = @transform_7, window_bounds = array<i64: 1, 2, 32, 16>}, {transform_indices = @transform_8, window_bounds = array<i64: 1, 2, 32, 16>}, {transform_indices = @transform_9, window_bounds = array<i64: 1, 2, 16, 32>}, {transform_indices = @transform_10, window_bounds = array<i64: 1, 32, 64>}, {transform_indices = @transform_11, window_bounds = array<i64: 1, 1, 64>}, {transform_indices = @transform_12, window_bounds = array<i64: 1, 64, 32>}, {transform_indices = @transform_13, window_bounds = array<i64: 1, 8, 32>}, {transform_indices = @transform_14, window_bounds = array<i64: 8, 32>}]} {
    %c0_i32 = arith.constant 0 : i32
    %0 = arith.cmpi eq, %arg1, %c0_i32 : i32
    %1 = arith.extui %0 : i1 to i32
    %c0_i32_0 = arith.constant 0 : i32
    %2 = arith.cmpi ne, %1, %c0_i32_0 : i32
    scf.if %2 {
      %c0_138 = arith.constant 0 : index
      %c0_139 = arith.constant 0 : index
      %262 = vector.load %arg2[%c0_138, %c0_139] : memref<8x32xf32, #tpu.memory_space<vmem>>, vector<8x32xf32>
      %c0_140 = arith.constant 0 : index
      %c0_141 = arith.constant 0 : index
      %263 = vector.load %arg16[%c0_140, %c0_141] : memref<8x32xf32, #tpu.memory_space<vmem>>, vector<8x32xf32>
      tpu.vector_store %arg16[%c0_140, %c0_141], %262 {strides = array<i32>} : memref<8x32xf32, #tpu.memory_space<vmem>>, vector<8x32xf32>,
    } else {
    }
    %3 = tpu.iota {dimensions = array<i32: 0>} : vector<8x8xi32>
    %4 = tpu.iota {dimensions = array<i32: 1>} : vector<8x8xi32>
    %5 = arith.cmpi sgt, %4, %3 : vector<8x8xi32>
    %6 = vector.shape_cast %5 : vector<8x8xi1> to vector<1x8x8xi1>
    %c0 = arith.constant 0 : index
    %c0_1 = arith.constant 0 : index
    %c0_2 = arith.constant 0 : index
    %7 = vector.load %arg15[%c0, %c0_1, %c0_2] : memref<1x8x32xf32, #tpu.memory_space<vmem>>, vector<1x8x32xf32>
    %8 = vector.shape_cast %7 : vector<1x8x32xf32> to vector<8x32xf32>
    %c0_3 = arith.constant 0 : index
    %c0_4 = arith.constant 0 : index
    %9 = vector.load %arg16[%c0_3, %c0_4] : memref<8x32xf32, #tpu.memory_space<vmem>>, vector<8x32xf32>
    %10 = arith.truncf %9 : vector<8x32xf32> to vector<8x32xbf16>
    %c0_5 = arith.constant 0 : index
    %c0_6 = arith.constant 0 : index
    %c0_7 = arith.constant 0 : index
    %c0_8 = arith.constant 0 : index
    %11 = vector.load %arg4[%c0_5, %c0_6, %c0_7, %c0_8] : memref<1x2x32x16xbf16, #tpu.memory_space<vmem>>, vector<1x1x32x16xbf16>
    %12 = vector.shape_cast %11 : vector<1x1x32x16xbf16> to vector<32x16xbf16>
    %cst = arith.constant dense<0.000000e+00> : vector<8x16xf32>
    %13 = tpu.matmul %10, %12, %cst {dimension_numbers = #tpu.dot_dimension_numbers<[1], [0], [0], [1], [0, 0, 1, 1], [], []>} : vector<8x32xbf16>, vector<32x16xbf16>, vector<8x16xf32> -> vector<8x16xf32>
    %c0_9 = arith.constant 0 : index
    %c0_10 = arith.constant 0 : index
    %c0_11 = arith.constant 0 : index
    %c0_12 = arith.constant 0 : index
    %14 = vector.load %arg5[%c0_9, %c0_10, %c0_11, %c0_12] : memref<1x2x32x16xbf16, #tpu.memory_space<vmem>>, vector<1x1x32x16xbf16>
    %15 = vector.shape_cast %14 : vector<1x1x32x16xbf16> to vector<32x16xbf16>
    %cst_13 = arith.constant dense<0.000000e+00> : vector<8x16xf32>
    %16 = tpu.matmul %10, %15, %cst_13 {dimension_numbers = #tpu.dot_dimension_numbers<[1], [0], [0], [1], [0, 0, 1, 1], [], []>} : vector<8x32xbf16>, vector<32x16xbf16>, vector<8x16xf32> -> vector<8x16xf32>
    %c0_14 = arith.constant 0 : index
    %c0_15 = arith.constant 0 : index
    %c0_16 = arith.constant 0 : index
    %c0_17 = arith.constant 0 : index
    %17 = vector.load %arg6[%c0_14, %c0_15, %c0_16, %c0_17] : memref<1x2x32x16xbf16, #tpu.memory_space<vmem>>, vector<1x1x32x16xbf16>
    %18 = vector.shape_cast %17 : vector<1x1x32x16xbf16> to vector<32x16xbf16>
    %cst_18 = arith.constant dense<0.000000e+00> : vector<8x16xf32>
    %19 = tpu.matmul %10, %18, %cst_18 {dimension_numbers = #tpu.dot_dimension_numbers<[1], [0], [0], [1], [0, 0, 1, 1], [], []>} : vector<8x32xbf16>, vector<32x16xbf16>, vector<8x16xf32> -> vector<8x16xf32>
    %cst_19 = arith.constant 2.500000e-01 : f32
    %20 = vector.broadcast %cst_19 : f32 to vector<8x16xf32>
    %21 = arith.mulf %13, %20 : vector<8x16xf32>
    %22 = vector.shape_cast %21 : vector<8x16xf32> to vector<1x8x16xf32>
    %23 = arith.truncf %22 : vector<1x8x16xf32> to vector<1x8x16xbf16>
    %24 = vector.shape_cast %16 : vector<8x16xf32> to vector<1x8x16xf32>
    %25 = arith.truncf %24 : vector<1x8x16xf32> to vector<1x8x16xbf16>
    %26 = vector.shape_cast %19 : vector<8x16xf32> to vector<1x8x16xf32>
    %27 = arith.truncf %26 : vector<1x8x16xf32> to vector<1x8x16xbf16>
    "tpu.trace_start"() <{level = 10 : i32, message = "bqd,bkd->bqk"}> : () -> ()
    %cst_20 = arith.constant dense<0.000000e+00> : vector<1x8x8xf32>
    %28 = tpu.matmul %23, %25, %cst_20 {dimension_numbers = #tpu.dot_dimension_numbers<[2], [2], [1], [1], [0, 0, 0, 1, 1, 1], [0], [0]>} : vector<1x8x16xbf16>, vector<1x8x16xbf16>, vector<1x8x8xf32> -> vector<1x8x8xf32>
    %cst_21 = arith.constant -1.000000e+09 : f32
    "tpu.trace_stop"() : () -> ()
    %29 = vector.broadcast %cst_21 : f32 to vector<1x8x8xf32>
    %30 = arith.select %6, %29, %28 : vector<1x8x8xi1>, vector<1x8x8xf32>
    %cst_22 = arith.constant dense<0xFF800000> : vector<1x8xf32>
    %31 = vector.multi_reduction <maximumf>, %30, %cst_22 [2] : vector<1x8x8xf32> to vector<1x8xf32>
    %32 = vector.shape_cast %31 : vector<1x8xf32> to vector<1x8x1xf32>
    %33 = vector.broadcast %32 : vector<1x8x1xf32> to vector<1x8x8xf32>
    %34 = arith.subf %30, %33 : vector<1x8x8xf32>
    %35 = math.exp %34 : vector<1x8x8xf32>
    %cst_23 = arith.constant dense<0.000000e+00> : vector<1x8xf32>
    %36 = vector.multi_reduction <add>, %35, %cst_23 [2] : vector<1x8x8xf32> to vector<1x8xf32>
    %37 = vector.shape_cast %36 : vector<1x8xf32> to vector<1x8x1xf32>
    %38 = tpu.reciprocal %37 {approx = true} : vector<1x8x1xf32> -> vector<1x8x1xf32>
    %39 = vector.broadcast %38 : vector<1x8x1xf32> to vector<1x8x8xf32>
    %40 = arith.mulf %35, %39 : vector<1x8x8xf32>
    %41 = arith.truncf %40 : vector<1x8x8xf32> to vector<1x8x8xbf16>
    "tpu.trace_start"() <{level = 10 : i32, message = "bqk,bkd->bqd"}> : () -> ()
    %cst_24 = arith.constant dense<0.000000e+00> : vector<1x8x16xf32>
    %42 = tpu.matmul %41, %27, %cst_24 {dimension_numbers = #tpu.dot_dimension_numbers<[2], [1], [1], [2], [0, 0, 0, 1, 1, 2], [0], [0]>} : vector<1x8x8xbf16>, vector<1x8x16xbf16>, vector<1x8x16xf32> -> vector<1x8x16xf32>
    "tpu.trace_stop"() : () -> ()
    %43 = vector.shape_cast %42 : vector<1x8x16xf32> to vector<8x16xf32>
    %44 = arith.truncf %43 : vector<8x16xf32> to vector<8x16xbf16>
    %c0_25 = arith.constant 0 : index
    %c0_26 = arith.constant 0 : index
    %c0_27 = arith.constant 0 : index
    %c0_28 = arith.constant 0 : index
    %45 = vector.load %arg7[%c0_25, %c0_26, %c0_27, %c0_28] : memref<1x2x16x32xbf16, #tpu.memory_space<vmem>>, vector<1x1x16x32xbf16>
    %46 = vector.shape_cast %45 : vector<1x1x16x32xbf16> to vector<16x32xbf16>
    %cst_29 = arith.constant dense<0.000000e+00> : vector<8x32xf32>
    %47 = tpu.matmul %44, %46, %cst_29 {dimension_numbers = #tpu.dot_dimension_numbers<[1], [0], [0], [1], [0, 0, 1, 1], [], []>} : vector<8x16xbf16>, vector<16x32xbf16>, vector<8x32xf32> -> vector<8x32xf32>
    %c0_30 = arith.constant 0 : index
    %c1 = arith.constant 1 : index
    %c0_31 = arith.constant 0 : index
    %c0_32 = arith.constant 0 : index
    %48 = vector.load %arg4[%c0_30, %c1, %c0_31, %c0_32] : memref<1x2x32x16xbf16, #tpu.memory_space<vmem>>, vector<1x1x32x16xbf16>
    %49 = vector.shape_cast %48 : vector<1x1x32x16xbf16> to vector<32x16xbf16>
    %cst_33 = arith.constant dense<0.000000e+00> : vector<8x16xf32>
    %50 = tpu.matmul %10, %49, %cst_33 {dimension_numbers = #tpu.dot_dimension_numbers<[1], [0], [0], [1], [0, 0, 1, 1], [], []>} : vector<8x32xbf16>, vector<32x16xbf16>, vector<8x16xf32> -> vector<8x16xf32>
    %c0_34 = arith.constant 0 : index
    %c1_35 = arith.constant 1 : index
    %c0_36 = arith.constant 0 : index
    %c0_37 = arith.constant 0 : index
    %51 = vector.load %arg5[%c0_34, %c1_35, %c0_36, %c0_37] : memref<1x2x32x16xbf16, #tpu.memory_space<vmem>>, vector<1x1x32x16xbf16>
    %52 = vector.shape_cast %51 : vector<1x1x32x16xbf16> to vector<32x16xbf16>
    %cst_38 = arith.constant dense<0.000000e+00> : vector<8x16xf32>
    %53 = tpu.matmul %10, %52, %cst_38 {dimension_numbers = #tpu.dot_dimension_numbers<[1], [0], [0], [1], [0, 0, 1, 1], [], []>} : vector<8x32xbf16>, vector<32x16xbf16>, vector<8x16xf32> -> vector<8x16xf32>
    %c0_39 = arith.constant 0 : index
    %c1_40 = arith.constant 1 : index
    %c0_41 = arith.constant 0 : index
    %c0_42 = arith.constant 0 : index
    %54 = vector.load %arg6[%c0_39, %c1_40, %c0_41, %c0_42] : memref<1x2x32x16xbf16, #tpu.memory_space<vmem>>, vector<1x1x32x16xbf16>
    %55 = vector.shape_cast %54 : vector<1x1x32x16xbf16> to vector<32x16xbf16>
    %cst_43 = arith.constant dense<0.000000e+00> : vector<8x16xf32>
    %56 = tpu.matmul %10, %55, %cst_43 {dimension_numbers = #tpu.dot_dimension_numbers<[1], [0], [0], [1], [0, 0, 1, 1], [], []>} : vector<8x32xbf16>, vector<32x16xbf16>, vector<8x16xf32> -> vector<8x16xf32>
    %cst_44 = arith.constant 2.500000e-01 : f32
    %57 = vector.broadcast %cst_44 : f32 to vector<8x16xf32>
    %58 = arith.mulf %50, %57 : vector<8x16xf32>
    %59 = vector.shape_cast %58 : vector<8x16xf32> to vector<1x8x16xf32>
    %60 = arith.truncf %59 : vector<1x8x16xf32> to vector<1x8x16xbf16>
    %61 = vector.shape_cast %53 : vector<8x16xf32> to vector<1x8x16xf32>
    %62 = arith.truncf %61 : vector<1x8x16xf32> to vector<1x8x16xbf16>
    %63 = vector.shape_cast %56 : vector<8x16xf32> to vector<1x8x16xf32>
    %64 = arith.truncf %63 : vector<1x8x16xf32> to vector<1x8x16xbf16>
    "tpu.trace_start"() <{level = 10 : i32, message = "bqd,bkd->bqk"}> : () -> ()
    %cst_45 = arith.constant dense<0.000000e+00> : vector<1x8x8xf32>
    %65 = tpu.matmul %60, %62, %cst_45 {dimension_numbers = #tpu.dot_dimension_numbers<[2], [2], [1], [1], [0, 0, 0, 1, 1, 1], [0], [0]>} : vector<1x8x16xbf16>, vector<1x8x16xbf16>, vector<1x8x8xf32> -> vector<1x8x8xf32>
    %cst_46 = arith.constant -1.000000e+09 : f32
    "tpu.trace_stop"() : () -> ()
    %66 = vector.broadcast %cst_46 : f32 to vector<1x8x8xf32>
    %67 = arith.select %6, %66, %65 : vector<1x8x8xi1>, vector<1x8x8xf32>
    %cst_47 = arith.constant dense<0xFF800000> : vector<1x8xf32>
    %68 = vector.multi_reduction <maximumf>, %67, %cst_47 [2] : vector<1x8x8xf32> to vector<1x8xf32>
    %69 = vector.shape_cast %68 : vector<1x8xf32> to vector<1x8x1xf32>
    %70 = vector.broadcast %69 : vector<1x8x1xf32> to vector<1x8x8xf32>
    %71 = arith.subf %67, %70 : vector<1x8x8xf32>
    %72 = math.exp %71 : vector<1x8x8xf32>
    %cst_48 = arith.constant dense<0.000000e+00> : vector<1x8xf32>
    %73 = vector.multi_reduction <add>, %72, %cst_48 [2] : vector<1x8x8xf32> to vector<1x8xf32>
    %74 = vector.shape_cast %73 : vector<1x8xf32> to vector<1x8x1xf32>
    %75 = tpu.reciprocal %74 {approx = true} : vector<1x8x1xf32> -> vector<1x8x1xf32>
    %76 = vector.broadcast %75 : vector<1x8x1xf32> to vector<1x8x8xf32>
    %77 = arith.mulf %72, %76 : vector<1x8x8xf32>
    %78 = arith.truncf %77 : vector<1x8x8xf32> to vector<1x8x8xbf16>
    "tpu.trace_start"() <{level = 10 : i32, message = "bqk,bkd->bqd"}> : () -> ()
    %cst_49 = arith.constant dense<0.000000e+00> : vector<1x8x16xf32>
    %79 = tpu.matmul %78, %64, %cst_49 {dimension_numbers = #tpu.dot_dimension_numbers<[2], [1], [1], [2], [0, 0, 0, 1, 1, 2], [0], [0]>} : vector<1x8x8xbf16>, vector<1x8x16xbf16>, vector<1x8x16xf32> -> vector<1x8x16xf32>
    "tpu.trace_stop"() : () -> ()
    %80 = vector.shape_cast %79 : vector<1x8x16xf32> to vector<8x16xf32>
    %81 = arith.truncf %80 : vector<8x16xf32> to vector<8x16xbf16>
    %c0_50 = arith.constant 0 : index
    %c1_51 = arith.constant 1 : index
    %c0_52 = arith.constant 0 : index
    %c0_53 = arith.constant 0 : index
    %82 = vector.load %arg7[%c0_50, %c1_51, %c0_52, %c0_53] : memref<1x2x16x32xbf16, #tpu.memory_space<vmem>>, vector<1x1x16x32xbf16>
    %83 = vector.shape_cast %82 : vector<1x1x16x32xbf16> to vector<16x32xbf16>
    %cst_54 = arith.constant dense<0.000000e+00> : vector<8x32xf32>
    %84 = tpu.matmul %81, %83, %cst_54 {dimension_numbers = #tpu.dot_dimension_numbers<[1], [0], [0], [1], [0, 0, 1, 1], [], []>} : vector<8x16xbf16>, vector<16x32xbf16>, vector<8x32xf32> -> vector<8x32xf32>
    %85 = arith.addf %47, %84 : vector<8x32xf32>
    %86 = arith.addf %85, %9 : vector<8x32xf32>
    %87 = vector.extract_strided_slice %8 {offsets = [0, 0], sizes = [1, 32], strides = [1, 1]} : vector<8x32xf32> to vector<1x32xf32>
    %88 = vector.extract_strided_slice %8 {offsets = [1, 0], sizes = [1, 32], strides = [1, 1]} : vector<8x32xf32> to vector<1x32xf32>
    %cst_55 = arith.constant dense<0.000000e+00> : vector<8xf32>
    %89 = vector.multi_reduction <add>, %86, %cst_55 [1] : vector<8x32xf32> to vector<8xf32>
    %90 = vector.shape_cast %89 : vector<8xf32> to vector<8x1xf32>
    %cst_56 = arith.constant 3.200000e+01 : f32
    %91 = vector.broadcast %cst_56 : f32 to vector<8x1xf32>
    %92 = arith.divf %90, %91 : vector<8x1xf32>
    %93 = vector.broadcast %92 : vector<8x1xf32> to vector<8x32xf32>
    %94 = arith.subf %86, %93 : vector<8x32xf32>
    %95 = vector.broadcast %92 : vector<8x1xf32> to vector<8x32xf32>
    %96 = arith.subf %86, %95 : vector<8x32xf32>
    %97 = arith.mulf %94, %96 : vector<8x32xf32>
    %cst_57 = arith.constant dense<0.000000e+00> : vector<8xf32>
    %98 = vector.multi_reduction <add>, %97, %cst_57 [1] : vector<8x32xf32> to vector<8xf32>
    %99 = vector.shape_cast %98 : vector<8xf32> to vector<8x1xf32>
    %cst_58 = arith.constant 3.200000e+01 : f32
    %100 = vector.broadcast %cst_58 : f32 to vector<8x1xf32>
    %101 = arith.divf %99, %100 : vector<8x1xf32>
    %102 = vector.broadcast %92 : vector<8x1xf32> to vector<8x32xf32>
    %103 = arith.subf %86, %102 : vector<8x32xf32>
    %cst_59 = arith.constant 9.99999997E-7 : f32
    %104 = vector.broadcast %cst_59 : f32 to vector<8x1xf32>
    %105 = arith.addf %101, %104 : vector<8x1xf32>
    %106 = math.rsqrt %105 : vector<8x1xf32>
    %107 = vector.broadcast %106 : vector<8x1xf32> to vector<8x32xf32>
    %108 = arith.mulf %103, %107 : vector<8x32xf32>
    %109 = vector.broadcast %87 : vector<1x32xf32> to vector<8x32xf32>
    %110 = arith.mulf %108, %109 : vector<8x32xf32>
    %111 = vector.broadcast %88 : vector<1x32xf32> to vector<8x32xf32>
    %112 = arith.addf %110, %111 : vector<8x32xf32>
    %113 = arith.truncf %112 : vector<8x32xf32> to vector<8x32xbf16>
    %c0_60 = arith.constant 0 : index
    %c0_61 = arith.constant 0 : index
    %114 = vector.load %arg3[%c0_60, %c0_61] : memref<8x32xbf16, #tpu.memory_space<vmem>>, vector<8x32xbf16>
    %c0_62 = arith.constant 0 : index
    %c0_63 = arith.constant 0 : index
    %c0_64 = arith.constant 0 : index
    %c0_65 = arith.constant 0 : index
    %115 = vector.load %arg8[%c0_62, %c0_63, %c0_64, %c0_65] : memref<1x2x32x16xbf16, #tpu.memory_space<vmem>>, vector<1x1x32x16xbf16>
    %116 = vector.shape_cast %115 : vector<1x1x32x16xbf16> to vector<32x16xbf16>
    %cst_66 = arith.constant dense<0.000000e+00> : vector<8x16xf32>
    %117 = tpu.matmul %113, %116, %cst_66 {dimension_numbers = #tpu.dot_dimension_numbers<[1], [0], [0], [1], [0, 0, 1, 1], [], []>} : vector<8x32xbf16>, vector<32x16xbf16>, vector<8x16xf32> -> vector<8x16xf32>
    %c0_67 = arith.constant 0 : index
    %c0_68 = arith.constant 0 : index
    %c0_69 = arith.constant 0 : index
    %c0_70 = arith.constant 0 : index
    %118 = vector.load %arg9[%c0_67, %c0_68, %c0_69, %c0_70] : memref<1x2x32x16xbf16, #tpu.memory_space<vmem>>, vector<1x1x32x16xbf16>
    %119 = vector.shape_cast %118 : vector<1x1x32x16xbf16> to vector<32x16xbf16>
    %cst_71 = arith.constant dense<0.000000e+00> : vector<8x16xf32>
    %120 = tpu.matmul %114, %119, %cst_71 {dimension_numbers = #tpu.dot_dimension_numbers<[1], [0], [0], [1], [0, 0, 1, 1], [], []>} : vector<8x32xbf16>, vector<32x16xbf16>, vector<8x16xf32> -> vector<8x16xf32>
    %c0_72 = arith.constant 0 : index
    %c0_73 = arith.constant 0 : index
    %c0_74 = arith.constant 0 : index
    %c0_75 = arith.constant 0 : index
    %121 = vector.load %arg10[%c0_72, %c0_73, %c0_74, %c0_75] : memref<1x2x32x16xbf16, #tpu.memory_space<vmem>>, vector<1x1x32x16xbf16>
    %122 = vector.shape_cast %121 : vector<1x1x32x16xbf16> to vector<32x16xbf16>
    %cst_76 = arith.constant dense<0.000000e+00> : vector<8x16xf32>
    %123 = tpu.matmul %114, %122, %cst_76 {dimension_numbers = #tpu.dot_dimension_numbers<[1], [0], [0], [1], [0, 0, 1, 1], [], []>} : vector<8x32xbf16>, vector<32x16xbf16>, vector<8x16xf32> -> vector<8x16xf32>
    %cst_77 = arith.constant 2.500000e-01 : f32
    %124 = vector.broadcast %cst_77 : f32 to vector<8x16xf32>
    %125 = arith.mulf %117, %124 : vector<8x16xf32>
    %126 = vector.shape_cast %125 : vector<8x16xf32> to vector<1x8x16xf32>
    %127 = arith.truncf %126 : vector<1x8x16xf32> to vector<1x8x16xbf16>
    %128 = vector.shape_cast %120 : vector<8x16xf32> to vector<1x8x16xf32>
    %129 = arith.truncf %128 : vector<1x8x16xf32> to vector<1x8x16xbf16>
    %130 = vector.shape_cast %123 : vector<8x16xf32> to vector<1x8x16xf32>
    %131 = arith.truncf %130 : vector<1x8x16xf32> to vector<1x8x16xbf16>
    "tpu.trace_start"() <{level = 10 : i32, message = "bqd,bkd->bqk"}> : () -> ()
    %cst_78 = arith.constant dense<0.000000e+00> : vector<1x8x8xf32>
    %132 = tpu.matmul %127, %129, %cst_78 {dimension_numbers = #tpu.dot_dimension_numbers<[2], [2], [1], [1], [0, 0, 0, 1, 1, 1], [0], [0]>} : vector<1x8x16xbf16>, vector<1x8x16xbf16>, vector<1x8x8xf32> -> vector<1x8x8xf32>
    %cst_79 = arith.constant -1.000000e+09 : f32
    "tpu.trace_stop"() : () -> ()
    %133 = vector.broadcast %cst_79 : f32 to vector<1x8x8xf32>
    %134 = arith.select %6, %133, %132 : vector<1x8x8xi1>, vector<1x8x8xf32>
    %cst_80 = arith.constant dense<0xFF800000> : vector<1x8xf32>
    %135 = vector.multi_reduction <maximumf>, %134, %cst_80 [2] : vector<1x8x8xf32> to vector<1x8xf32>
    %136 = vector.shape_cast %135 : vector<1x8xf32> to vector<1x8x1xf32>
    %137 = vector.broadcast %136 : vector<1x8x1xf32> to vector<1x8x8xf32>
    %138 = arith.subf %134, %137 : vector<1x8x8xf32>
    %139 = math.exp %138 : vector<1x8x8xf32>
    %cst_81 = arith.constant dense<0.000000e+00> : vector<1x8xf32>
    %140 = vector.multi_reduction <add>, %139, %cst_81 [2] : vector<1x8x8xf32> to vector<1x8xf32>
    %141 = vector.shape_cast %140 : vector<1x8xf32> to vector<1x8x1xf32>
    %142 = tpu.reciprocal %141 {approx = true} : vector<1x8x1xf32> -> vector<1x8x1xf32>
    %143 = vector.broadcast %142 : vector<1x8x1xf32> to vector<1x8x8xf32>
    %144 = arith.mulf %139, %143 : vector<1x8x8xf32>
    %145 = arith.truncf %144 : vector<1x8x8xf32> to vector<1x8x8xbf16>
    "tpu.trace_start"() <{level = 10 : i32, message = "bqk,bkd->bqd"}> : () -> ()
    %cst_82 = arith.constant dense<0.000000e+00> : vector<1x8x16xf32>
    %146 = tpu.matmul %145, %131, %cst_82 {dimension_numbers = #tpu.dot_dimension_numbers<[2], [1], [1], [2], [0, 0, 0, 1, 1, 2], [0], [0]>} : vector<1x8x8xbf16>, vector<1x8x16xbf16>, vector<1x8x16xf32> -> vector<1x8x16xf32>
    "tpu.trace_stop"() : () -> ()
    %147 = vector.shape_cast %146 : vector<1x8x16xf32> to vector<8x16xf32>
    %148 = arith.truncf %147 : vector<8x16xf32> to vector<8x16xbf16>
    %c0_83 = arith.constant 0 : index
    %c0_84 = arith.constant 0 : index
    %c0_85 = arith.constant 0 : index
    %c0_86 = arith.constant 0 : index
    %149 = vector.load %arg11[%c0_83, %c0_84, %c0_85, %c0_86] : memref<1x2x16x32xbf16, #tpu.memory_space<vmem>>, vector<1x1x16x32xbf16>
    %150 = vector.shape_cast %149 : vector<1x1x16x32xbf16> to vector<16x32xbf16>
    %cst_87 = arith.constant dense<0.000000e+00> : vector<8x32xf32>
    %151 = tpu.matmul %148, %150, %cst_87 {dimension_numbers = #tpu.dot_dimension_numbers<[1], [0], [0], [1], [0, 0, 1, 1], [], []>} : vector<8x16xbf16>, vector<16x32xbf16>, vector<8x32xf32> -> vector<8x32xf32>
    %c0_88 = arith.constant 0 : index
    %c1_89 = arith.constant 1 : index
    %c0_90 = arith.constant 0 : index
    %c0_91 = arith.constant 0 : index
    %152 = vector.load %arg8[%c0_88, %c1_89, %c0_90, %c0_91] : memref<1x2x32x16xbf16, #tpu.memory_space<vmem>>, vector<1x1x32x16xbf16>
    %153 = vector.shape_cast %152 : vector<1x1x32x16xbf16> to vector<32x16xbf16>
    %cst_92 = arith.constant dense<0.000000e+00> : vector<8x16xf32>
    %154 = tpu.matmul %113, %153, %cst_92 {dimension_numbers = #tpu.dot_dimension_numbers<[1], [0], [0], [1], [0, 0, 1, 1], [], []>} : vector<8x32xbf16>, vector<32x16xbf16>, vector<8x16xf32> -> vector<8x16xf32>
    %c0_93 = arith.constant 0 : index
    %c1_94 = arith.constant 1 : index
    %c0_95 = arith.constant 0 : index
    %c0_96 = arith.constant 0 : index
    %155 = vector.load %arg9[%c0_93, %c1_94, %c0_95, %c0_96] : memref<1x2x32x16xbf16, #tpu.memory_space<vmem>>, vector<1x1x32x16xbf16>
    %156 = vector.shape_cast %155 : vector<1x1x32x16xbf16> to vector<32x16xbf16>
    %cst_97 = arith.constant dense<0.000000e+00> : vector<8x16xf32>
    %157 = tpu.matmul %114, %156, %cst_97 {dimension_numbers = #tpu.dot_dimension_numbers<[1], [0], [0], [1], [0, 0, 1, 1], [], []>} : vector<8x32xbf16>, vector<32x16xbf16>, vector<8x16xf32> -> vector<8x16xf32>
    %c0_98 = arith.constant 0 : index
    %c1_99 = arith.constant 1 : index
    %c0_100 = arith.constant 0 : index
    %c0_101 = arith.constant 0 : index
    %158 = vector.load %arg10[%c0_98, %c1_99, %c0_100, %c0_101] : memref<1x2x32x16xbf16, #tpu.memory_space<vmem>>, vector<1x1x32x16xbf16>
    %159 = vector.shape_cast %158 : vector<1x1x32x16xbf16> to vector<32x16xbf16>
    %cst_102 = arith.constant dense<0.000000e+00> : vector<8x16xf32>
    %160 = tpu.matmul %114, %159, %cst_102 {dimension_numbers = #tpu.dot_dimension_numbers<[1], [0], [0], [1], [0, 0, 1, 1], [], []>} : vector<8x32xbf16>, vector<32x16xbf16>, vector<8x16xf32> -> vector<8x16xf32>
    %cst_103 = arith.constant 2.500000e-01 : f32
    %161 = vector.broadcast %cst_103 : f32 to vector<8x16xf32>
    %162 = arith.mulf %154, %161 : vector<8x16xf32>
    %163 = vector.shape_cast %162 : vector<8x16xf32> to vector<1x8x16xf32>
    %164 = arith.truncf %163 : vector<1x8x16xf32> to vector<1x8x16xbf16>
    %165 = vector.shape_cast %157 : vector<8x16xf32> to vector<1x8x16xf32>
    %166 = arith.truncf %165 : vector<1x8x16xf32> to vector<1x8x16xbf16>
    %167 = vector.shape_cast %160 : vector<8x16xf32> to vector<1x8x16xf32>
    %168 = arith.truncf %167 : vector<1x8x16xf32> to vector<1x8x16xbf16>
    "tpu.trace_start"() <{level = 10 : i32, message = "bqd,bkd->bqk"}> : () -> ()
    %cst_104 = arith.constant dense<0.000000e+00> : vector<1x8x8xf32>
    %169 = tpu.matmul %164, %166, %cst_104 {dimension_numbers = #tpu.dot_dimension_numbers<[2], [2], [1], [1], [0, 0, 0, 1, 1, 1], [0], [0]>} : vector<1x8x16xbf16>, vector<1x8x16xbf16>, vector<1x8x8xf32> -> vector<1x8x8xf32>
    %cst_105 = arith.constant -1.000000e+09 : f32
    "tpu.trace_stop"() : () -> ()
    %170 = vector.broadcast %cst_105 : f32 to vector<1x8x8xf32>
    %171 = arith.select %6, %170, %169 : vector<1x8x8xi1>, vector<1x8x8xf32>
    %cst_106 = arith.constant dense<0xFF800000> : vector<1x8xf32>
    %172 = vector.multi_reduction <maximumf>, %171, %cst_106 [2] : vector<1x8x8xf32> to vector<1x8xf32>
    %173 = vector.shape_cast %172 : vector<1x8xf32> to vector<1x8x1xf32>
    %174 = vector.broadcast %173 : vector<1x8x1xf32> to vector<1x8x8xf32>
    %175 = arith.subf %171, %174 : vector<1x8x8xf32>
    %176 = math.exp %175 : vector<1x8x8xf32>
    %cst_107 = arith.constant dense<0.000000e+00> : vector<1x8xf32>
    %177 = vector.multi_reduction <add>, %176, %cst_107 [2] : vector<1x8x8xf32> to vector<1x8xf32>
    %178 = vector.shape_cast %177 : vector<1x8xf32> to vector<1x8x1xf32>
    %179 = tpu.reciprocal %178 {approx = true} : vector<1x8x1xf32> -> vector<1x8x1xf32>
    %180 = vector.broadcast %179 : vector<1x8x1xf32> to vector<1x8x8xf32>
    %181 = arith.mulf %176, %180 : vector<1x8x8xf32>
    %182 = arith.truncf %181 : vector<1x8x8xf32> to vector<1x8x8xbf16>
    "tpu.trace_start"() <{level = 10 : i32, message = "bqk,bkd->bqd"}> : () -> ()
    %cst_108 = arith.constant dense<0.000000e+00> : vector<1x8x16xf32>
    %183 = tpu.matmul %182, %168, %cst_108 {dimension_numbers = #tpu.dot_dimension_numbers<[2], [1], [1], [2], [0, 0, 0, 1, 1, 2], [0], [0]>} : vector<1x8x8xbf16>, vector<1x8x16xbf16>, vector<1x8x16xf32> -> vector<1x8x16xf32>
    "tpu.trace_stop"() : () -> ()
    %184 = vector.shape_cast %183 : vector<1x8x16xf32> to vector<8x16xf32>
    %185 = arith.truncf %184 : vector<8x16xf32> to vector<8x16xbf16>
    %c0_109 = arith.constant 0 : index
    %c1_110 = arith.constant 1 : index
    %c0_111 = arith.constant 0 : index
    %c0_112 = arith.constant 0 : index
    %186 = vector.load %arg11[%c0_109, %c1_110, %c0_111, %c0_112] : memref<1x2x16x32xbf16, #tpu.memory_space<vmem>>, vector<1x1x16x32xbf16>
    %187 = vector.shape_cast %186 : vector<1x1x16x32xbf16> to vector<16x32xbf16>
    %cst_113 = arith.constant dense<0.000000e+00> : vector<8x32xf32>
    %188 = tpu.matmul %185, %187, %cst_113 {dimension_numbers = #tpu.dot_dimension_numbers<[1], [0], [0], [1], [0, 0, 1, 1], [], []>} : vector<8x16xbf16>, vector<16x32xbf16>, vector<8x32xf32> -> vector<8x32xf32>
    %189 = arith.addf %151, %188 : vector<8x32xf32>
    %190 = arith.addf %189, %112 : vector<8x32xf32>
    %191 = vector.extract_strided_slice %8 {offsets = [2, 0], sizes = [1, 32], strides = [1, 1]} : vector<8x32xf32> to vector<1x32xf32>
    %192 = vector.extract_strided_slice %8 {offsets = [3, 0], sizes = [1, 32], strides = [1, 1]} : vector<8x32xf32> to vector<1x32xf32>
    %cst_114 = arith.constant dense<0.000000e+00> : vector<8xf32>
    %193 = vector.multi_reduction <add>, %190, %cst_114 [1] : vector<8x32xf32> to vector<8xf32>
    %194 = vector.shape_cast %193 : vector<8xf32> to vector<8x1xf32>
    %cst_115 = arith.constant 3.200000e+01 : f32
    %195 = vector.broadcast %cst_115 : f32 to vector<8x1xf32>
    %196 = arith.divf %194, %195 : vector<8x1xf32>
    %197 = vector.broadcast %196 : vector<8x1xf32> to vector<8x32xf32>
    %198 = arith.subf %190, %197 : vector<8x32xf32>
    %199 = vector.broadcast %196 : vector<8x1xf32> to vector<8x32xf32>
    %200 = arith.subf %190, %199 : vector<8x32xf32>
    %201 = arith.mulf %198, %200 : vector<8x32xf32>
    %cst_116 = arith.constant dense<0.000000e+00> : vector<8xf32>
    %202 = vector.multi_reduction <add>, %201, %cst_116 [1] : vector<8x32xf32> to vector<8xf32>
    %203 = vector.shape_cast %202 : vector<8xf32> to vector<8x1xf32>
    %cst_117 = arith.constant 3.200000e+01 : f32
    %204 = vector.broadcast %cst_117 : f32 to vector<8x1xf32>
    %205 = arith.divf %203, %204 : vector<8x1xf32>
    %206 = vector.broadcast %196 : vector<8x1xf32> to vector<8x32xf32>
    %207 = arith.subf %190, %206 : vector<8x32xf32>
    %cst_118 = arith.constant 9.99999997E-7 : f32
    %208 = vector.broadcast %cst_118 : f32 to vector<8x1xf32>
    %209 = arith.addf %205, %208 : vector<8x1xf32>
    %210 = math.rsqrt %209 : vector<8x1xf32>
    %211 = vector.broadcast %210 : vector<8x1xf32> to vector<8x32xf32>
    %212 = arith.mulf %207, %211 : vector<8x32xf32>
    %213 = vector.broadcast %191 : vector<1x32xf32> to vector<8x32xf32>
    %214 = arith.mulf %212, %213 : vector<8x32xf32>
    %215 = vector.broadcast %192 : vector<1x32xf32> to vector<8x32xf32>
    %216 = arith.addf %214, %215 : vector<8x32xf32>
    %217 = arith.truncf %216 : vector<8x32xf32> to vector<8x32xbf16>
    %c0_119 = arith.constant 0 : index
    %c0_120 = arith.constant 0 : index
    %c0_121 = arith.constant 0 : index
    %218 = vector.load %arg12[%c0_119, %c0_120, %c0_121] : memref<1x32x64xbf16, #tpu.memory_space<vmem>>, vector<1x32x64xbf16>
    %219 = vector.shape_cast %218 : vector<1x32x64xbf16> to vector<32x64xbf16>
    %cst_122 = arith.constant dense<0.000000e+00> : vector<8x64xf32>
    %220 = tpu.matmul %217, %219, %cst_122 {dimension_numbers = #tpu.dot_dimension_numbers<[1], [0], [0], [1], [0, 0, 1, 1], [], []>} : vector<8x32xbf16>, vector<32x64xbf16>, vector<8x64xf32> -> vector<8x64xf32>
    %c0_123 = arith.constant 0 : index
    %c0_124 = arith.constant 0 : index
    %c0_125 = arith.constant 0 : index
    %221 = vector.load %arg13[%c0_123, %c0_124, %c0_125] : memref<1x1x64xf32, #tpu.memory_space<vmem>>, vector<1x1x64xf32>
    %222 = vector.shape_cast %221 : vector<1x1x64xf32> to vector<1x64xf32>
    %223 = vector.broadcast %222 : vector<1x64xf32> to vector<8x64xf32>
    %224 = arith.addf %220, %223 : vector<8x64xf32>
    %cst_126 = arith.constant 0.000000e+00 : f32
    %225 = vector.broadcast %cst_126 : f32 to vector<8x64xf32>
    %226 = arith.maximumf %224, %225 : vector<8x64xf32>
    %227 = arith.truncf %226 : vector<8x64xf32> to vector<8x64xbf16>
    %c0_127 = arith.constant 0 : index
    %c0_128 = arith.constant 0 : index
    %c0_129 = arith.constant 0 : index
    %228 = vector.load %arg14[%c0_127, %c0_128, %c0_129] : memref<1x64x32xbf16, #tpu.memory_space<vmem>>, vector<1x64x32xbf16>
    %229 = vector.shape_cast %228 : vector<1x64x32xbf16> to vector<64x32xbf16>
    %cst_130 = arith.constant dense<0.000000e+00> : vector<8x32xf32>
    %230 = tpu.matmul %227, %229, %cst_130 {dimension_numbers = #tpu.dot_dimension_numbers<[1], [0], [0], [1], [0, 0, 1, 1], [], []>} : vector<8x64xbf16>, vector<64x32xbf16>, vector<8x32xf32> -> vector<8x32xf32>
    %231 = vector.extract_strided_slice %8 {offsets = [4, 0], sizes = [1, 32], strides = [1, 1]} : vector<8x32xf32> to vector<1x32xf32>
    %232 = vector.broadcast %231 : vector<1x32xf32> to vector<8x32xf32>
    %233 = arith.addf %230, %232 : vector<8x32xf32>
    %234 = arith.addf %233, %216 : vector<8x32xf32>
    %235 = vector.extract_strided_slice %8 {offsets = [5, 0], sizes = [1, 32], strides = [1, 1]} : vector<8x32xf32> to vector<1x32xf32>
    %236 = vector.extract_strided_slice %8 {offsets = [6, 0], sizes = [1, 32], strides = [1, 1]} : vector<8x32xf32> to vector<1x32xf32>
    %cst_131 = arith.constant dense<0.000000e+00> : vector<8xf32>
    %237 = vector.multi_reduction <add>, %234, %cst_131 [1] : vector<8x32xf32> to vector<8xf32>
    %238 = vector.shape_cast %237 : vector<8xf32> to vector<8x1xf32>
    %cst_132 = arith.constant 3.200000e+01 : f32
    %239 = vector.broadcast %cst_132 : f32 to vector<8x1xf32>
    %240 = arith.divf %238, %239 : vector<8x1xf32>
    %241 = vector.broadcast %240 : vector<8x1xf32> to vector<8x32xf32>
    %242 = arith.subf %234, %241 : vector<8x32xf32>
    %243 = vector.broadcast %240 : vector<8x1xf32> to vector<8x32xf32>
    %244 = arith.subf %234, %243 : vector<8x32xf32>
    %245 = arith.mulf %242, %244 : vector<8x32xf32>
    %cst_133 = arith.constant dense<0.000000e+00> : vector<8xf32>
    %246 = vector.multi_reduction <add>, %245, %cst_133 [1] : vector<8x32xf32> to vector<8xf32>
    %247 = vector.shape_cast %246 : vector<8xf32> to vector<8x1xf32>
    %cst_134 = arith.constant 3.200000e+01 : f32
    %248 = vector.broadcast %cst_134 : f32 to vector<8x1xf32>
    %249 = arith.divf %247, %248 : vector<8x1xf32>
    %250 = vector.broadcast %240 : vector<8x1xf32> to vector<8x32xf32>
    %251 = arith.subf %234, %250 : vector<8x32xf32>
    %cst_135 = arith.constant 9.99999997E-7 : f32
    %252 = vector.broadcast %cst_135 : f32 to vector<8x1xf32>
    %253 = arith.addf %249, %252 : vector<8x1xf32>
    %254 = math.rsqrt %253 : vector<8x1xf32>
    %255 = vector.broadcast %254 : vector<8x1xf32> to vector<8x32xf32>
    %256 = arith.mulf %251, %255 : vector<8x32xf32>
    %257 = vector.broadcast %235 : vector<1x32xf32> to vector<8x32xf32>
    %258 = arith.mulf %256, %257 : vector<8x32xf32>
    %259 = vector.broadcast %236 : vector<1x32xf32> to vector<8x32xf32>
    %260 = arith.addf %258, %259 : vector<8x32xf32>
    %c0_136 = arith.constant 0 : index
    %c0_137 = arith.constant 0 : index
    %261 = vector.load %arg16[%c0_136, %c0_137] : memref<8x32xf32, #tpu.memory_space<vmem>>, vector<8x32xf32>
    tpu.vector_store %arg16[%c0_136, %c0_137], %260 {strides = array<i32>} : memref<8x32xf32, #tpu.memory_space<vmem>>, vector<8x32xf32>,
    return
  }
  func.func @transform_0(%arg0: i32, %arg1: i32) -> (i32, i32) {
    %c0_i32 = arith.constant 0 : i32
    %c0_i32_0 = arith.constant 0 : i32
    return %arg0, %c0_i32 : i32, i32
  }
  func.func @transform_1(%arg0: i32, %arg1: i32) -> (i32, i32) {
    %c0_i32 = arith.constant 0 : i32
    %c0_i32_0 = arith.constant 0 : i32
    return %arg0, %c0_i32 : i32, i32
  }
  func.func @transform_2(%arg0: i32, %arg1: i32) -> (i32, i32, i32, i32) {
    %c0_i32 = arith.constant 0 : i32
    %c0_i32_0 = arith.constant 0 : i32
    %c0_i32_1 = arith.constant 0 : i32
    %c0_i32_2 = arith.constant 0 : i32
    return %arg1, %c0_i32, %c0_i32_0, %c0_i32_1 : i32, i32, i32, i32
  }
  func.func @transform_3(%arg0: i32, %arg1: i32) -> (i32, i32, i32, i32) {
    %c0_i32 = arith.constant 0 : i32
    %c0_i32_0 = arith.constant 0 : i32
    %c0_i32_1 = arith.constant 0 : i32
    %c0_i32_2 = arith.constant 0 : i32
    return %arg1, %c0_i32, %c0_i32_0, %c0_i32_1 : i32, i32, i32, i32
  }
  func.func @transform_4(%arg0: i32, %arg1: i32) -> (i32, i32, i32, i32) {
    %c0_i32 = arith.constant 0 : i32
    %c0_i32_0 = arith.constant 0 : i32
    %c0_i32_1 = arith.constant 0 : i32
    %c0_i32_2 = arith.constant 0 : i32
    return %arg1, %c0_i32, %c0_i32_0, %c0_i32_1 : i32, i32, i32, i32
  }
  func.func @transform_5(%arg0: i32, %arg1: i32) -> (i32, i32, i32, i32) {
    %c0_i32 = arith.constant 0 : i32
    %c0_i32_0 = arith.constant 0 : i32
    %c0_i32_1 = arith.constant 0 : i32
    %c0_i32_2 = arith.constant 0 : i32
    return %arg1, %c0_i32, %c0_i32_0, %c0_i32_1 : i32, i32, i32, i32
  }
  func.func @transform_6(%arg0: i32, %arg1: i32) -> (i32, i32, i32, i32) {
    %c0_i32 = arith.constant 0 : i32
    %c0_i32_0 = arith.constant 0 : i32
    %c0_i32_1 = arith.constant 0 : i32
    %c0_i32_2 = arith.constant 0 : i32
    return %arg1, %c0_i32, %c0_i32_0, %c0_i32_1 : i32, i32, i32, i32
  }
  func.func @transform_7(%arg0: i32, %arg1: i32) -> (i32, i32, i32, i32) {
    %c0_i32 = arith.constant 0 : i32
    %c0_i32_0 = arith.constant 0 : i32
    %c0_i32_1 = arith.constant 0 : i32
    %c0_i32_2 = arith.constant 0 : i32
    return %arg1, %c0_i32, %c0_i32_0, %c0_i32_1 : i32, i32, i32, i32
  }
  func.func @transform_8(%arg0: i32, %arg1: i32) -> (i32, i32, i32, i32) {
    %c0_i32 = arith.constant 0 : i32
    %c0_i32_0 = arith.constant 0 : i32
    %c0_i32_1 = arith.constant 0 : i32
    %c0_i32_2 = arith.constant 0 : i32
    return %arg1, %c0_i32, %c0_i32_0, %c0_i32_1 : i32, i32, i32, i32
  }
  func.func @transform_9(%arg0: i32, %arg1: i32) -> (i32, i32, i32, i32) {
    %c0_i32 = arith.constant 0 : i32
    %c0_i32_0 = arith.constant 0 : i32
    %c0_i32_1 = arith.constant 0 : i32
    %c0_i32_2 = arith.constant 0 : i32
    return %arg1, %c0_i32, %c0_i32_0, %c0_i32_1 : i32, i32, i32, i32
  }
  func.func @transform_10(%arg0: i32, %arg1: i32) -> (i32, i32, i32) {
    %c0_i32 = arith.constant 0 : i32
    %c0_i32_0 = arith.constant 0 : i32
    %c0_i32_1 = arith.constant 0 : i32
    return %arg1, %c0_i32, %c0_i32_0 : i32, i32, i32
  }
  func.func @transform_11(%arg0: i32, %arg1: i32) -> (i32, i32, i32) {
    %c0_i32 = arith.constant 0 : i32
    %c0_i32_0 = arith.constant 0 : i32
    %c0_i32_1 = arith.constant 0 : i32
    return %arg1, %c0_i32, %c0_i32_0 : i32, i32, i32
  }
  func.func @transform_12(%arg0: i32, %arg1: i32) -> (i32, i32, i32) {
    %c0_i32 = arith.constant 0 : i32
    %c0_i32_0 = arith.constant 0 : i32
    %c0_i32_1 = arith.constant 0 : i32
    return %arg1, %c0_i32, %c0_i32_0 : i32, i32, i32
  }
  func.func @transform_13(%arg0: i32, %arg1: i32) -> (i32, i32, i32) {
    %c0_i32 = arith.constant 0 : i32
    %c0_i32_0 = arith.constant 0 : i32
    %c0_i32_1 = arith.constant 0 : i32
    return %arg1, %c0_i32, %c0_i32_0 : i32, i32, i32
  }
  func.func @transform_14(%arg0: i32, %arg1: i32) -> (i32, i32) {
    %c0_i32 = arith.constant 0 : i32
    %c0_i32_0 = arith.constant 0 : i32
    return %arg0, %c0_i32 : i32, i32
  }
}

</mosaic_0001>

<llo_original>
// kernel: decoder_forward.2
$region0: #{decoder_forward.2}
  #allocation0 [shape = 'u32[]', space=smem, size = 0x4, offset = 0x4, fixed_abs, tag = 'smem constant byte address 0x4 - core index']
  #allocation1 [shape = 'u32[72,128]{1,0:T(1,128)}', space=vmem, size = 0x9000, scoped, tag = 'internal scratch']
  %s0 = inlined_call_operand.vmem [shape: f32[16,5], index: 0, kind: input, shape index: {}]
  %s1 = inlined_call_operand.vmem [shape: f32[5,32], index: 1, kind: input, shape index: {}]
  %s2 = inlined_call_operand.vmem [shape: f32[1,32], index: 2, kind: input, shape index: {}]
  %s3 = inlined_call_operand.vmem [shape: f32[8,32], index: 3, kind: input, shape index: {}]
  %s4 = inlined_call_operand.vmem [shape: f32[16,32], index: 4, kind: output, shape index: {}]
  %s5 = sld [smem:[#allocation0]]
  $region26: #{decoder_forward.2} parent=0
    _
  %s7 = ssub.s32 1, %s5
  %s8 = scalar_select 0, %s7, %s5
  // Predicated region
  $region2: #{decoder_forward.2} parent=0 // pred_check
    _
  $region3: #{decoder_forward.2} parent=0 // pred_check_branch
    %10 = sbr.rel (0) target = $region5
  $region4: #{decoder_forward.2} parent=0 // pred_region
    _
  $region5: #{decoder_forward.2} parent=0 // pred_fallthru
    _
  // Predicated region
  $region6: #{decoder_forward.2} parent=0 // pred_check
    _
  $region7: #{decoder_forward.2} parent=0 // pred_check_branch
    %12 = sbr.rel (0) target = $region9
  $region8: #{decoder_forward.2} parent=0 // pred_region
    _
  $region9: #{decoder_forward.2} parent=0 // pred_fallthru
    _
  // Predicated region
  $region10: #{decoder_forward.2} parent=0 // pred_check
    _
  $region11: #{decoder_forward.2} parent=0 // pred_check_branch
    %14 = sbr.rel (0) target = $region13
  $region12: #{decoder_forward.2} parent=0 // pred_region
    _
  $region13: #{decoder_forward.2} parent=0 // pred_fallthru
    _
  // Predicated region
  $region14: #{decoder_forward.2} parent=0 // pred_check
    _
  $region15: #{decoder_forward.2} parent=0 // pred_check_branch
    %16 = sbr.rel (0) target = $region17
  $region16: #{decoder_forward.2} parent=0 // pred_region
    _
  $region17: #{decoder_forward.2} parent=0 // pred_fallthru
    _
  %v17 = vld [vmem:[%s0] sm:$0xff]
  %v18 = vld [vmem:[%s0 + $0x8] sm:$0xff]
  %v19 = vld [vmem:[%s1] sm:$0x1f]
  %v20 = vld [vmem:[%s2] sm:$0x1]
  %v22 = vperm.slane %v20, 0
  %vm24 = vcmask 39936
  %v26 = vsel %vm24, %v17, 0
  %v29 = vsel %vm24, %v18, 0
  %vm31 = vcmask 1044480
  %v33 = vsel %vm31, %v19, 0
  %35 = vmatpush.msra.mxu0 0.0
  %36 = vmatpush.msra.mxu0 0.0
  %37 = vmatpush.msra.mxu0 0.0
  %38 = vmatpush.msra.mxu0 0.0
  %39 = vmatpush.msra.mxu0 0.0
  %40 = vmatpush.msra.mxu0 0.0
  %41 = vmatpush.msra.mxu0 0.0
  %42 = vmatpush.msra.mxu0 0.0
  %43 = vmatpush.msra.mxu0 0.0
  %44 = vmatpush.msra.mxu0 0.0
  %45 = vmatpush.msra.mxu0 0.0
  %46 = vmatpush.msra.mxu0 0.0
  %47 = vmatpush.msra.mxu0 0.0
  %48 = vmatpush.msra.mxu0 0.0
  %49 = vmatpush.msra.mxu0 0.0
  %50 = vmatpush.msra.mxu0 %v33
  %51 = vmatmul.f32.gmra.mxu0 %v26
  %v52 = vpop.f32.mrf.mxu0
  %v53 = vadd.f32 %v22, %v52
  %54 = vmatmul.f32.gmra.mxu0 %v29
  %v55 = vpop.f32.mrf.mxu0
  %v56 = vadd.f32 %v22, %v55
  %57 = vdwg.mxu0
  %v58 = vld [vmem:[%s3] sm:$0xff]
  %v59 = vadd.f32 %v53, %v58
  %v60 = vadd.f32 %v56, %v58
  %vm61 = vcmask 261120
  %62 = vst.msk [vmem:[%s4] sm:$0xff] %vm61, %v59
  %63 = vst.msk [vmem:[%s4 + $0x8] sm:$0xff] %vm61, %v60
  // Predicated region
  $region18: #{decoder_forward.2} parent=0 // pred_check
    _
  $region19: #{decoder_forward.2} parent=0 // pred_check_branch
    %65 = sbr.rel (0) target = $region21
  $region20: #{decoder_forward.2} parent=0 // pred_region
    _
  $region21: #{decoder_forward.2} parent=0 // pred_fallthru
    _
  // Predicated region
  $region22: #{decoder_forward.2} parent=0 // pred_check
    _
  $region23: #{decoder_forward.2} parent=0 // pred_check_branch
    %67 = sbr.rel (0) target = $region25
  $region24: #{decoder_forward.2} parent=0 // pred_region
    _
  $region25: #{decoder_forward.2} parent=0 // pred_fallthru
    _

// kernel: decoder_forward.3
$region0: #{decoder_forward.3}
  #allocation0 [shape = 'u32[]', space=smem, size = 0x4, offset = 0x4, fixed_abs, tag = 'smem constant byte address 0x4 - core index']
  #allocation1 [shape = 'u32[72,128]{1,0:T(1,128)}', space=vmem, size = 0x9000, scoped, tag = 'internal scratch']
  %s0 = inlined_call_operand.vmem [shape: f32[16,32], index: 0, kind: input, shape index: {}]
  %s1 = inlined_call_operand.vmem [shape: bf16[16,32], index: 1, kind: input, shape index: {}]
  %s2 = inlined_call_operand.vmem [shape: bf16[2,2,32,16], index: 2, kind: input, shape index: {}]
  %s3 = inlined_call_operand.vmem [shape: bf16[2,2,32,16], index: 3, kind: input, shape index: {}]
  %s4 = inlined_call_operand.vmem [shape: bf16[2,2,32,16], index: 4, kind: input, shape index: {}]
  %s5 = inlined_call_operand.vmem [shape: bf16[2,2,16,32], index: 5, kind: input, shape index: {}]
  %s6 = inlined_call_operand.vmem [shape: bf16[2,2,32,16], index: 6, kind: input, shape index: {}]
  %s7 = inlined_call_operand.vmem [shape: bf16[2,2,32,16], index: 7, kind: input, shape index: {}]
  %s8 = inlined_call_operand.vmem [shape: bf16[2,2,32,16], index: 8, kind: input, shape index: {}]
  %s9 = inlined_call_operand.vmem [shape: bf16[2,2,16,32], index: 9, kind: input, shape index: {}]
  %s10 = inlined_call_operand.vmem [shape: bf16[2,32,64], index: 10, kind: input, shape index: {}]
  %s11 = inlined_call_operand.vmem [shape: f32[2,1,64], index: 11, kind: input, shape index: {}]
  %s12 = inlined_call_operand.vmem [shape: bf16[2,64,32], index: 12, kind: input, shape index: {}]
  %s13 = inlined_call_operand.vmem [shape: f32[2,8,32], index: 13, kind: input, shape index: {}]
  %s14 = inlined_call_operand.hbm [shape: f32[16,32], index: 14, kind: output, shape index: {}]
  %s15 = sld [smem:[#allocation0]]
  $region93: #{decoder_forward.3} parent=0
    _
  %s17 = ssub.s32 1, %s15
  %s18 = scalar_select 0, %s17, %s15
  $region1: #{decoder_forward.3} parent=0
    #allocation2 [shape = 'u8[8192]{0}', space=vmem, size = 0x2000, scoped, tag = 'output window, operand 0']
    #allocation3 [shape = 's32[2]{0}', space=sflag, size = 0x8, scoped, tag = 'scoped memory for decoder_forward.3']
    %19 = vsyncpa [#allocation3], 0
    %s20 = scalar_lea.sflag [#allocation3], 1
    %21 = vsyncpa %s20, 0
    loop: start=0, step=1, limit=6
    $region2: #{decoder_forward.3} parent=1 // loop_pre_header
      _
    $region3: #{decoder_forward.3} parent=1 // loop_header
      %s23 = sphi 0, %s27
      %p24 = scmp.ge.s32.totalorder %s23, 6
      %s30 = sphi 0, %s42
      %s31 = sphi 0, %s38
      %s32 = sphi 0, %s30
      %s33 = sphi 0, %s31
      %s34 = sphi 0, %s32
      %s35 = sphi 0, %s33
      %s45 = sphi 0, %s47
      %s48 = sphi 0, %s45
      %s49 = sphi 0, %s48
      %s65 = sphi 0, %s49
      %s71 = sphi 0, %s73
      %s74 = sphi 0, %s71
      %s75 = sphi 0, %s74
      %s91 = sphi 0, %s75
      %s97 = sphi 0, %s99
      %s100 = sphi 0, %s97
      %s101 = sphi 0, %s100
      %s117 = sphi 0, %s101
      %s123 = sphi 0, %s125
      %s126 = sphi 0, %s123
      %s127 = sphi 0, %s126
      %s143 = sphi 0, %s127
      %s149 = sphi 0, %s151
      %s152 = sphi 0, %s149
      %s153 = sphi 0, %s152
      %s169 = sphi 0, %s153
      %s175 = sphi 0, %s177
      %s178 = sphi 0, %s175
      %s179 = sphi 0, %s178
      %s195 = sphi 0, %s179
      %s201 = sphi 0, %s203
      %s204 = sphi 0, %s201
      %s205 = sphi 0, %s204
      %s221 = sphi 0, %s205
      %s227 = sphi 0, %s229
      %s230 = sphi 0, %s227
      %s231 = sphi 0, %s230
      %s247 = sphi 0, %s231
      %s253 = sphi 0, %s255
      %s256 = sphi 0, %s253
      %s257 = sphi 0, %s256
      %s273 = sphi 0, %s257
      %s279 = sphi 0, %s281
      %s282 = sphi 0, %s279
      %s283 = sphi 0, %s282
      %s299 = sphi 0, %s283
      %s305 = sphi 0, %s307
      %s308 = sphi 0, %s305
      %s309 = sphi 0, %s308
      %s325 = sphi 0, %s309
      %s331 = sphi 0, %s333
      %s334 = sphi 0, %s331
      %s335 = sphi 0, %s334
      %s351 = sphi 0, %s335
      %s357 = sphi 0, %s359
      %s360 = sphi 0, %s357
      %s361 = sphi 0, %s360
      %s377 = sphi 0, %s361
      %s383 = sphi 0, %s385
      %s386 = sphi 0, %s383
      %s387 = sphi 0, %s386
      %s403 = sphi 0, %s387
      %s409 = sphi 0, %s411
      %s412 = sphi 0, %s409
      %s413 = sphi 0, %s412
      %s429 = sphi 0, %s413
    $region4: #{decoder_forward.3} parent=1 // loop_header_branch
      %26 = sbr.rel (%p24) target = $region8
    $region5: #{decoder_forward.3} parent=1 // loop_body
      %s28 = ssub.s32 %s23, 1
      %s29 = ssub.s32 %s23, 2
      %s36 = sadd.s32 1, %s31
      %p37 = scmp.ge.s32.totalorder %s36, 2
      %s38 = scalar_select %p37, 0, %s36
      %s39 = sadd.s32 1, %s30
      %s40 = scalar_select %p37, %s39, %s30
      %p41 = scmp.ge.s32.totalorder %s40, 2
      %s42 = scalar_select %p41, 0, %s40
      %s43 = ssub.s32 %s30, %s42
      %p44 = scmp.eq.s32.totalorder %s43, 0
      %s46 = sadd.s32 %s45, 1
      %s47 = scalar_select %p44, %s45, %s46
      %p50 = pneg %p44
      %p51 = scmp.eq.s32.totalorder %s23, 3
      %p52 = por %p50, %p51
      %p53 = scmp.ne.s32.totalorder %s45, %s48
      %p54 = scmp.eq.s32.totalorder %s23, 0
      %p55 = por %p53, %p54
      %p56 = scmp.ne.s32.totalorder %s45, %s48
      %p57 = scmp.eq.s32.totalorder %s28, 3
      %p58 = por %p56, %p57
      %p59 = scmp.ne.s32.totalorder %s48, %s49
      %p60 = scmp.eq.s32.totalorder %s28, 0
      %p61 = por %p59, %p60
      %p62 = scmp.ne.s32.totalorder %s48, %s49
      %p63 = scmp.eq.s32.totalorder %s29, 3
      %p64 = por %p62, %p63
      %p66 = scmp.ne.s32.totalorder %s49, %s65
      %p67 = scmp.eq.s32.totalorder %s29, 0
      %p68 = por %p66, %p67
      %s69 = ssub.s32 %s30, %s42
      %p70 = scmp.eq.s32.totalorder %s69, 0
      %s72 = sadd.s32 %s71, 1
      %s73 = scalar_select %p70, %s71, %s72
      %p76 = pneg %p70
      %p77 = scmp.eq.s32.totalorder %s23, 3
      %p78 = por %p76, %p77
      %p79 = scmp.ne.s32.totalorder %s71, %s74
      %p80 = scmp.eq.s32.totalorder %s23, 0
      %p81 = por %p79, %p80
      %p82 = scmp.ne.s32.totalorder %s71, %s74
      %p83 = scmp.eq.s32.totalorder %s28, 3
      %p84 = por %p82, %p83
      %p85 = scmp.ne.s32.totalorder %s74, %s75
      %p86 = scmp.eq.s32.totalorder %s28, 0
      %p87 = por %p85, %p86
      %p88 = scmp.ne.s32.totalorder %s74, %s75
      %p89 = scmp.eq.s32.totalorder %s29, 3
      %p90 = por %p88, %p89
      %p92 = scmp.ne.s32.totalorder %s75, %s91
      %p93 = scmp.eq.s32.totalorder %s29, 0
      %p94 = por %p92, %p93
      %s95 = ssub.s32 %s31, %s38
      %p96 = scmp.eq.s32.totalorder %s95, 0
      %s98 = sadd.s32 %s97, 1
      %s99 = scalar_select %p96, %s97, %s98
      %p102 = pneg %p96
      %p103 = scmp.eq.s32.totalorder %s23, 3
      %p104 = por %p102, %p103
      %p105 = scmp.ne.s32.totalorder %s97, %s100
      %p106 = scmp.eq.s32.totalorder %s23, 0
      %p107 = por %p105, %p106
      %p108 = scmp.ne.s32.totalorder %s97, %s100
      %p109 = scmp.eq.s32.totalorder %s28, 3
      %p110 = por %p108, %p109
      %p111 = scmp.ne.s32.totalorder %s100, %s101
      %p112 = scmp.eq.s32.totalorder %s28, 0
      %p113 = por %p111, %p112
      %p114 = scmp.ne.s32.totalorder %s100, %s101
      %p115 = scmp.eq.s32.totalorder %s29, 3
      %p116 = por %p114, %p115
      %p118 = scmp.ne.s32.totalorder %s101, %s117
      %p119 = scmp.eq.s32.totalorder %s29, 0
      %p120 = por %p118, %p119
      %s121 = ssub.s32 %s31, %s38
      %p122 = scmp.eq.s32.totalorder %s121, 0
      %s124 = sadd.s32 %s123, 1
      %s125 = scalar_select %p122, %s123, %s124
      %p128 = pneg %p122
      %p129 = scmp.eq.s32.totalorder %s23, 3
      %p130 = por %p128, %p129
      %p131 = scmp.ne.s32.totalorder %s123, %s126
      %p132 = scmp.eq.s32.totalorder %s23, 0
      %p133 = por %p131, %p132
      %p134 = scmp.ne.s32.totalorder %s123, %s126
      %p135 = scmp.eq.s32.totalorder %s28, 3
      %p136 = por %p134, %p135
      %p137 = scmp.ne.s32.totalorder %s126, %s127
      %p138 = scmp.eq.s32.totalorder %s28, 0
      %p139 = por %p137, %p138
      %p140 = scmp.ne.s32.totalorder %s126, %s127
      %p141 = scmp.eq.s32.totalorder %s29, 3
      %p142 = por %p140, %p141
      %p144 = scmp.ne.s32.totalorder %s127, %s143
      %p145 = scmp.eq.s32.totalorder %s29, 0
      %p146 = por %p144, %p145
      %s147 = ssub.s32 %s31, %s38
      %p148 = scmp.eq.s32.totalorder %s147, 0
      %s150 = sadd.s32 %s149, 1
      %s151 = scalar_select %p148, %s149, %s150
      %p154 = pneg %p148
      %p155 = scmp.eq.s32.totalorder %s23, 3
      %p156 = por %p154, %p155
      %p157 = scmp.ne.s32.totalorder %s149, %s152
      %p158 = scmp.eq.s32.totalorder %s23, 0
      %p159 = por %p157, %p158
      %p160 = scmp.ne.s32.totalorder %s149, %s152
      %p161 = scmp.eq.s32.totalorder %s28, 3
      %p162 = por %p160, %p161
      %p163 = scmp.ne.s32.totalorder %s152, %s153
      %p164 = scmp.eq.s32.totalorder %s28, 0
      %p165 = por %p163, %p164
      %p166 = scmp.ne.s32.totalorder %s152, %s153
      %p167 = scmp.eq.s32.totalorder %s29, 3
      %p168 = por %p166, %p167
      %p170 = scmp.ne.s32.totalorder %s153, %s169
      %p171 = scmp.eq.s32.totalorder %s29, 0
      %p172 = por %p170, %p171
      %s173 = ssub.s32 %s31, %s38
      %p174 = scmp.eq.s32.totalorder %s173, 0
      %s176 = sadd.s32 %s175, 1
      %s177 = scalar_select %p174, %s175, %s176
      %p180 = pneg %p174
      %p181 = scmp.eq.s32.totalorder %s23, 3
      %p182 = por %p180, %p181
      %p183 = scmp.ne.s32.totalorder %s175, %s178
      %p184 = scmp.eq.s32.totalorder %s23, 0
      %p185 = por %p183, %p184
      %p186 = scmp.ne.s32.totalorder %s175, %s178
      %p187 = scmp.eq.s32.totalorder %s28, 3
      %p188 = por %p186, %p187
      %p189 = scmp.ne.s32.totalorder %s178, %s179
      %p190 = scmp.eq.s32.totalorder %s28, 0
      %p191 = por %p189, %p190
      %p192 = scmp.ne.s32.totalorder %s178, %s179
      %p193 = scmp.eq.s32.totalorder %s29, 3
      %p194 = por %p192, %p193
      %p196 = scmp.ne.s32.totalorder %s179, %s195
      %p197 = scmp.eq.s32.totalorder %s29, 0
      %p198 = por %p196, %p197
      %s199 = ssub.s32 %s31, %s38
      %p200 = scmp.eq.s32.totalorder %s199, 0
      %s202 = sadd.s32 %s201, 1
      %s203 = scalar_select %p200, %s201, %s202
      %p206 = pneg %p200
      %p207 = scmp.eq.s32.totalorder %s23, 3
      %p208 = por %p206, %p207
      %p209 = scmp.ne.s32.totalorder %s201, %s204
      %p210 = scmp.eq.s32.totalorder %s23, 0
      %p211 = por %p209, %p210
      %p212 = scmp.ne.s32.totalorder %s201, %s204
      %p213 = scmp.eq.s32.totalorder %s28, 3
      %p214 = por %p212, %p213
      %p215 = scmp.ne.s32.totalorder %s204, %s205
      %p216 = scmp.eq.s32.totalorder %s28, 0
      %p217 = por %p215, %p216
      %p218 = scmp.ne.s32.totalorder %s204, %s205
      %p219 = scmp.eq.s32.totalorder %s29, 3
      %p220 = por %p218, %p219
      %p222 = scmp.ne.s32.totalorder %s205, %s221
      %p223 = scmp.eq.s32.totalorder %s29, 0
      %p224 = por %p222, %p223
      %s225 = ssub.s32 %s31, %s38
      %p226 = scmp.eq.s32.totalorder %s225, 0
      %s228 = sadd.s32 %s227, 1
      %s229 = scalar_select %p226, %s227, %s228
      %p232 = pneg %p226
      %p233 = scmp.eq.s32.totalorder %s23, 3
      %p234 = por %p232, %p233
      %p235 = scmp.ne.s32.totalorder %s227, %s230
      %p236 = scmp.eq.s32.totalorder %s23, 0
      %p237 = por %p235, %p236
      %p238 = scmp.ne.s32.totalorder %s227, %s230
      %p239 = scmp.eq.s32.totalorder %s28, 3
      %p240 = por %p238, %p239
      %p241 = scmp.ne.s32.totalorder %s230, %s231
      %p242 = scmp.eq.s32.totalorder %s28, 0
      %p243 = por %p241, %p242
      %p244 = scmp.ne.s32.totalorder %s230, %s231
      %p245 = scmp.eq.s32.totalorder %s29, 3
      %p246 = por %p244, %p245
      %p248 = scmp.ne.s32.totalorder %s231, %s247
      %p249 = scmp.eq.s32.totalorder %s29, 0
      %p250 = por %p248, %p249
      %s251 = ssub.s32 %s31, %s38
      %p252 = scmp.eq.s32.totalorder %s251, 0
      %s254 = sadd.s32 %s253, 1
      %s255 = scalar_select %p252, %s253, %s254
      %p258 = pneg %p252
      %p259 = scmp.eq.s32.totalorder %s23, 3
      %p260 = por %p258, %p259
      %p261 = scmp.ne.s32.totalorder %s253, %s256
      %p262 = scmp.eq.s32.totalorder %s23, 0
      %p263 = por %p261, %p262
      %p264 = scmp.ne.s32.totalorder %s253, %s256
      %p265 = scmp.eq.s32.totalorder %s28, 3
      %p266 = por %p264, %p265
      %p267 = scmp.ne.s32.totalorder %s256, %s257
      %p268 = scmp.eq.s32.totalorder %s28, 0
      %p269 = por %p267, %p268
      %p270 = scmp.ne.s32.totalorder %s256, %s257
      %p271 = scmp.eq.s32.totalorder %s29, 3
      %p272 = por %p270, %p271
      %p274 = scmp.ne.s32.totalorder %s257, %s273
      %p275 = scmp.eq.s32.totalorder %s29, 0
      %p276 = por %p274, %p275
      %s277 = ssub.s32 %s31, %s38
      %p278 = scmp.eq.s32.totalorder %s277, 0
      %s280 = sadd.s32 %s279, 1
      %s281 = scalar_select %p278, %s279, %s280
      %p284 = pneg %p278
      %p285 = scmp.eq.s32.totalorder %s23, 3
      %p286 = por %p284, %p285
      %p287 = scmp.ne.s32.totalorder %s279, %s282
      %p288 = scmp.eq.s32.totalorder %s23, 0
      %p289 = por %p287, %p288
      %p290 = scmp.ne.s32.totalorder %s279, %s282
      %p291 = scmp.eq.s32.totalorder %s28, 3
      %p292 = por %p290, %p291
      %p293 = scmp.ne.s32.totalorder %s282, %s283
      %p294 = scmp.eq.s32.totalorder %s28, 0
      %p295 = por %p293, %p294
      %p296 = scmp.ne.s32.totalorder %s282, %s283
      %p297 = scmp.eq.s32.totalorder %s29, 3
      %p298 = por %p296, %p297
      %p300 = scmp.ne.s32.totalorder %s283, %s299
      %p301 = scmp.eq.s32.totalorder %s29, 0
      %p302 = por %p300, %p301
      %s303 = ssub.s32 %s31, %s38
      %p304 = scmp.eq.s32.totalorder %s303, 0
      %s306 = sadd.s32 %s305, 1
      %s307 = scalar_select %p304, %s305, %s306
      %p310 = pneg %p304
      %p311 = scmp.eq.s32.totalorder %s23, 3
      %p312 = por %p310, %p311
      %p313 = scmp.ne.s32.totalorder %s305, %s308
      %p314 = scmp.eq.s32.totalorder %s23, 0
      %p315 = por %p313, %p314
      %p316 = scmp.ne.s32.totalorder %s305, %s308
      %p317 = scmp.eq.s32.totalorder %s28, 3
      %p318 = por %p316, %p317
      %p319 = scmp.ne.s32.totalorder %s308, %s309
      %p320 = scmp.eq.s32.totalorder %s28, 0
      %p321 = por %p319, %p320
      %p322 = scmp.ne.s32.totalorder %s308, %s309
      %p323 = scmp.eq.s32.totalorder %s29, 3
      %p324 = por %p322, %p323
      %p326 = scmp.ne.s32.totalorder %s309, %s325
      %p327 = scmp.eq.s32.totalorder %s29, 0
      %p328 = por %p326, %p327
      %s329 = ssub.s32 %s31, %s38
      %p330 = scmp.eq.s32.totalorder %s329, 0
      %s332 = sadd.s32 %s331, 1
      %s333 = scalar_select %p330, %s331, %s332
      %p336 = pneg %p330
      %p337 = scmp.eq.s32.totalorder %s23, 3
      %p338 = por %p336, %p337
      %p339 = scmp.ne.s32.totalorder %s331, %s334
      %p340 = scmp.eq.s32.totalorder %s23, 0
      %p341 = por %p339, %p340
      %p342 = scmp.ne.s32.totalorder %s331, %s334
      %p343 = scmp.eq.s32.totalorder %s28, 3
      %p344 = por %p342, %p343
      %p345 = scmp.ne.s32.totalorder %s334, %s335
      %p346 = scmp.eq.s32.totalorder %s28, 0
      %p347 = por %p345, %p346
      %p348 = scmp.ne.s32.totalorder %s334, %s335
      %p349 = scmp.eq.s32.totalorder %s29, 3
      %p350 = por %p348, %p349
      %p352 = scmp.ne.s32.totalorder %s335, %s351
      %p353 = scmp.eq.s32.totalorder %s29, 0
      %p354 = por %p352, %p353
      %s355 = ssub.s32 %s31, %s38
      %p356 = scmp.eq.s32.totalorder %s355, 0
      %s358 = sadd.s32 %s357, 1
      %s359 = scalar_select %p356, %s357, %s358
      %p362 = pneg %p356
      %p363 = scmp.eq.s32.totalorder %s23, 3
      %p364 = por %p362, %p363
      %p365 = scmp.ne.s32.totalorder %s357, %s360
      %p366 = scmp.eq.s32.totalorder %s23, 0
      %p367 = por %p365, %p366
      %p368 = scmp.ne.s32.totalorder %s357, %s360
      %p369 = scmp.eq.s32.totalorder %s28, 3
      %p370 = por %p368, %p369
      %p371 = scmp.ne.s32.totalorder %s360, %s361
      %p372 = scmp.eq.s32.totalorder %s28, 0
      %p373 = por %p371, %p372
      %p374 = scmp.ne.s32.totalorder %s360, %s361
      %p375 = scmp.eq.s32.totalorder %s29, 3
      %p376 = por %p374, %p375
      %p378 = scmp.ne.s32.totalorder %s361, %s377
      %p379 = scmp.eq.s32.totalorder %s29, 0
      %p380 = por %p378, %p379
      %s381 = ssub.s32 %s31, %s38
      %p382 = scmp.eq.s32.totalorder %s381, 0
      %s384 = sadd.s32 %s383, 1
      %s385 = scalar_select %p382, %s383, %s384
      %p388 = pneg %p382
      %p389 = scmp.eq.s32.totalorder %s23, 3
      %p390 = por %p388, %p389
      %p391 = scmp.ne.s32.totalorder %s383, %s386
      %p392 = scmp.eq.s32.totalorder %s23, 0
      %p393 = por %p391, %p392
      %p394 = scmp.ne.s32.totalorder %s383, %s386
      %p395 = scmp.eq.s32.totalorder %s28, 3
      %p396 = por %p394, %p395
      %p397 = scmp.ne.s32.totalorder %s386, %s387
      %p398 = scmp.eq.s32.totalorder %s28, 0
      %p399 = por %p397, %p398
      %p400 = scmp.ne.s32.totalorder %s386, %s387
      %p401 = scmp.eq.s32.totalorder %s29, 3
      %p402 = por %p400, %p401
      %p404 = scmp.ne.s32.totalorder %s387, %s403
      %p405 = scmp.eq.s32.totalorder %s29, 0
      %p406 = por %p404, %p405
      %s407 = ssub.s32 %s30, %s42
      %p408 = scmp.eq.s32.totalorder %s407, 0
      %s410 = sadd.s32 %s409, 1
      %s411 = scalar_select %p408, %s409, %s410
      %p414 = pneg %p408
      %p415 = scmp.eq.s32.totalorder %s23, 3
      %p416 = por %p414, %p415
      %p417 = scmp.ne.s32.totalorder %s409, %s412
      %p418 = scmp.eq.s32.totalorder %s23, 0
      %p419 = por %p417, %p418
      %p420 = scmp.ne.s32.totalorder %s409, %s412
      %p421 = scmp.eq.s32.totalorder %s28, 3
      %p422 = por %p420, %p421
      %p423 = scmp.ne.s32.totalorder %s412, %s413
      %p424 = scmp.eq.s32.totalorder %s28, 0
      %p425 = por %p423, %p424
      %p426 = scmp.ne.s32.totalorder %s412, %s413
      %p427 = scmp.eq.s32.totalorder %s29, 3
      %p428 = por %p426, %p427
      %p430 = scmp.ne.s32.totalorder %s413, %s429
      %p431 = scmp.eq.s32.totalorder %s29, 0
      %p432 = por %p430, %p431
      %p433 = scmp.le.s32.totalorder 1, %s23
      %p434 = scmp.lt.s32.totalorder %s23, 5
      %p435 = pnand %p433, %p434
      %p436 = pneg %p435
      // Predicated region
      $region9: #{decoder_forward.3} parent=5 // pred_check
        _
      $region10: #{decoder_forward.3} parent=5 // pred_check_branch
        %438 = sbr.rel (%p435) target = $region12
      $region11: #{decoder_forward.3} parent=5 // pred_region
        %s439 = ssub.s32 %s23, 1
      $region12: #{decoder_forward.3} parent=5 // pred_fallthru
        _
      %p440 = scmp.lt.s32.totalorder %s23, 4
      // Predicated region
      $region13: #{decoder_forward.3} parent=5 // pred_check
        %p441 = pneg %p440
      $region14: #{decoder_forward.3} parent=5 // pred_check_branch
        %443 = sbr.rel (%p441) target = $region16
      $region15: #{decoder_forward.3} parent=5 // pred_region
        // Predicated region
        $region17: #{decoder_forward.3} parent=15 // pred_check
          %p444 = pneg %p55
        $region18: #{decoder_forward.3} parent=15 // pred_check_branch
          %446 = sbr.rel (%p444) target = $region20
        $region19: #{decoder_forward.3} parent=15 // pred_region
          %p447 = scmp.lt.s32.totalorder %s30, 1
          %s448 = scalar_select %p447, %s30, 1
          %s449 = smul.addr %s448, 8
          %s450 = scalar_lea.vmem %s0, %s449
        $region20: #{decoder_forward.3} parent=15 // pred_fallthru
          _
        // Predicated region
        $region21: #{decoder_forward.3} parent=15 // pred_check
          %p451 = pneg %p81
        $region22: #{decoder_forward.3} parent=15 // pred_check_branch
          %453 = sbr.rel (%p451) target = $region24
        $region23: #{decoder_forward.3} parent=15 // pred_region
          %p454 = scmp.lt.s32.totalorder %s30, 1
          %s455 = scalar_select %p454, %s30, 1
          %s456 = smul.addr %s455, 4
          %s457 = scalar_lea.vmem %s1, %s456
        $region24: #{decoder_forward.3} parent=15 // pred_fallthru
          _
        // Predicated region
        $region25: #{decoder_forward.3} parent=15 // pred_check
          %p458 = pneg %p107
        $region26: #{decoder_forward.3} parent=15 // pred_check_branch
          %460 = sbr.rel (%p458) target = $region28
        $region27: #{decoder_forward.3} parent=15 // pred_region
          %p461 = scmp.lt.s32.totalorder %s31, 1
          %s462 = scalar_select %p461, %s31, 1
          %s463 = smul.addr %s462, 8
          %s464 = smul.addr %s463, 4
          %s465 = scalar_lea.vmem %s2, %s464
        $region28: #{decoder_forward.3} parent=15 // pred_fallthru
          _
        // Predicated region
        $region29: #{decoder_forward.3} parent=15 // pred_check
          %p466 = pneg %p133
        $region30: #{decoder_forward.3} parent=15 // pred_check_branch
          %468 = sbr.rel (%p466) target = $region32
        $region31: #{decoder_forward.3} parent=15 // pred_region
          %p469 = scmp.lt.s32.totalorder %s31, 1
          %s470 = scalar_select %p469, %s31, 1
          %s471 = smul.addr %s470, 8
          %s472 = smul.addr %s471, 4
          %s473 = scalar_lea.vmem %s3, %s472
        $region32: #{decoder_forward.3} parent=15 // pred_fallthru
          _
        // Predicated region
        $region33: #{decoder_forward.3} parent=15 // pred_check
          %p474 = pneg %p159
        $region34: #{decoder_forward.3} parent=15 // pred_check_branch
          %476 = sbr.rel (%p474) target = $region36
        $region35: #{decoder_forward.3} parent=15 // pred_region
          %p477 = scmp.lt.s32.totalorder %s31, 1
          %s478 = scalar_select %p477, %s31, 1
          %s479 = smul.addr %s478, 8
          %s480 = smul.addr %s479, 4
          %s481 = scalar_lea.vmem %s4, %s480
        $region36: #{decoder_forward.3} parent=15 // pred_fallthru
          _
        // Predicated region
        $region37: #{decoder_forward.3} parent=15 // pred_check
          %p482 = pneg %p185
        $region38: #{decoder_forward.3} parent=15 // pred_check_branch
          %484 = sbr.rel (%p482) target = $region40
        $region39: #{decoder_forward.3} parent=15 // pred_region
          %p485 = scmp.lt.s32.totalorder %s31, 1
          %s486 = scalar_select %p485, %s31, 1
          %s487 = smul.addr %s486, 4
          %s488 = smul.addr %s487, 4
          %s489 = scalar_lea.vmem %s5, %s488
        $region40: #{decoder_forward.3} parent=15 // pred_fallthru
          _
        // Predicated region
        $region41: #{decoder_forward.3} parent=15 // pred_check
          %p490 = pneg %p211
        $region42: #{decoder_forward.3} parent=15 // pred_check_branch
          %492 = sbr.rel (%p490) target = $region44
        $region43: #{decoder_forward.3} parent=15 // pred_region
          %p493 = scmp.lt.s32.totalorder %s31, 1
          %s494 = scalar_select %p493, %s31, 1
          %s495 = smul.addr %s494, 8
          %s496 = smul.addr %s495, 4
          %s497 = scalar_lea.vmem %s6, %s496
        $region44: #{decoder_forward.3} parent=15 // pred_fallthru
          _
        // Predicated region
        $region45: #{decoder_forward.3} parent=15 // pred_check
          %p498 = pneg %p237
        $region46: #{decoder_forward.3} parent=15 // pred_check_branch
          %500 = sbr.rel (%p498) target = $region48
        $region47: #{decoder_forward.3} parent=15 // pred_region
          %p501 = scmp.lt.s32.totalorder %s31, 1
          %s502 = scalar_select %p501, %s31, 1
          %s503 = smul.addr %s502, 8
          %s504 = smul.addr %s503, 4
          %s505 = scalar_lea.vmem %s7, %s504
        $region48: #{decoder_forward.3} parent=15 // pred_fallthru
          _
        // Predicated region
        $region49: #{decoder_forward.3} parent=15 // pred_check
          %p506 = pneg %p263
        $region50: #{decoder_forward.3} parent=15 // pred_check_branch
          %508 = sbr.rel (%p506) target = $region52
        $region51: #{decoder_forward.3} parent=15 // pred_region
          %p509 = scmp.lt.s32.totalorder %s31, 1
          %s510 = scalar_select %p509, %s31, 1
          %s511 = smul.addr %s510, 8
          %s512 = smul.addr %s511, 4
          %s513 = scalar_lea.vmem %s8, %s512
        $region52: #{decoder_forward.3} parent=15 // pred_fallthru
          _
        // Predicated region
        $region53: #{decoder_forward.3} parent=15 // pred_check
          %p514 = pneg %p289
        $region54: #{decoder_forward.3} parent=15 // pred_check_branch
          %516 = sbr.rel (%p514) target = $region56
        $region55: #{decoder_forward.3} parent=15 // pred_region
          %p517 = scmp.lt.s32.totalorder %s31, 1
          %s518 = scalar_select %p517, %s31, 1
          %s519 = smul.addr %s518, 4
          %s520 = smul.addr %s519, 4
          %s521 = scalar_lea.vmem %s9, %s520
        $region56: #{decoder_forward.3} parent=15 // pred_fallthru
          _
        // Predicated region
        $region57: #{decoder_forward.3} parent=15 // pred_check
          %p522 = pneg %p315
        $region58: #{decoder_forward.3} parent=15 // pred_check_branch
          %524 = sbr.rel (%p522) target = $region60
        $region59: #{decoder_forward.3} parent=15 // pred_region
          %p525 = scmp.lt.s32.totalorder %s31, 1
          %s526 = scalar_select %p525, %s31, 1
          %s527 = smul.addr %s526, 4
          %s528 = smul.addr %s527, 4
          %s529 = scalar_lea.vmem %s10, %s528
        $region60: #{decoder_forward.3} parent=15 // pred_fallthru
          _
        // Predicated region
        $region61: #{decoder_forward.3} parent=15 // pred_check
          %p530 = pneg %p341
        $region62: #{decoder_forward.3} parent=15 // pred_check_branch
          %532 = sbr.rel (%p530) target = $region64
        $region63: #{decoder_forward.3} parent=15 // pred_region
          %p533 = scmp.lt.s32.totalorder %s31, 1
          %s534 = scalar_select %p533, %s31, 1
          %s535 = scalar_lea.vmem %s11, %s534
        $region64: #{decoder_forward.3} parent=15 // pred_fallthru
          _
        // Predicated region
        $region65: #{decoder_forward.3} parent=15 // pred_check
          %p536 = pneg %p367
        $region66: #{decoder_forward.3} parent=15 // pred_check_branch
          %538 = sbr.rel (%p536) target = $region68
        $region67: #{decoder_forward.3} parent=15 // pred_region
          %p539 = scmp.lt.s32.totalorder %s31, 1
          %s540 = scalar_select %p539, %s31, 1
          %s541 = smul.addr %s540, 8
          %s542 = smul.addr %s541, 4
          %s543 = scalar_lea.vmem %s12, %s542
        $region68: #{decoder_forward.3} parent=15 // pred_fallthru
          _
        // Predicated region
        $region69: #{decoder_forward.3} parent=15 // pred_check
          %p544 = pneg %p393
        $region70: #{decoder_forward.3} parent=15 // pred_check_branch
          %546 = sbr.rel (%p544) target = $region72
        $region71: #{decoder_forward.3} parent=15 // pred_region
          %p547 = scmp.lt.s32.totalorder %s31, 1
          %s548 = scalar_select %p547, %s31, 1
          %s549 = smul.addr %s548, 8
          %s550 = scalar_lea.vmem %s13, %s549
        $region72: #{decoder_forward.3} parent=15 // pred_fallthru
          _
      $region16: #{decoder_forward.3} parent=5 // pred_fallthru
        _
      %p551 = scmp.le.s32.totalorder 1, %s23
      %p552 = scmp.lt.s32.totalorder %s23, 5
      %p553 = pnand %p551, %p552
      %p554 = pneg %p553
      // Predicated region
      $region73: #{decoder_forward.3} parent=5 // pred_check
        _
      $region74: #{decoder_forward.3} parent=5 // pred_check_branch
        %556 = sbr.rel (%p553) target = $region76
      $region75: #{decoder_forward.3} parent=5 // pred_region
        %s557 = ssub.s32 %s23, 1
        %p558 = scmp.lt.s32.totalorder %s32, 1
        %s559 = scalar_select %p558, %s32, 1
        %s560 = smul.addr %s559, 8
        %s561 = scalar_lea.vmem %s0, %s560
        %p562 = pneg %p61
        %p563 = pneg %p58
        %p564 = scmp.lt.s32.totalorder %s32, 1
        %s565 = scalar_select %p564, %s32, 1
        %s566 = smul.addr %s565, 4
        %s567 = scalar_lea.vmem %s1, %s566
        %p568 = pneg %p87
        %p569 = pneg %p84
        %p570 = scmp.lt.s32.totalorder %s33, 1
        %s571 = scalar_select %p570, %s33, 1
        %s572 = smul.addr %s571, 8
        %s573 = smul.addr %s572, 4
        %s574 = scalar_lea.vmem %s2, %s573
        %p575 = pneg %p113
        %p576 = pneg %p110
        %p577 = scmp.lt.s32.totalorder %s33, 1
        %s578 = scalar_select %p577, %s33, 1
        %s579 = smul.addr %s578, 8
        %s580 = smul.addr %s579, 4
        %s581 = scalar_lea.vmem %s3, %s580
        %p582 = pneg %p139
        %p583 = pneg %p136
        %p584 = scmp.lt.s32.totalorder %s33, 1
        %s585 = scalar_select %p584, %s33, 1
        %s586 = smul.addr %s585, 8
        %s587 = smul.addr %s586, 4
        %s588 = scalar_lea.vmem %s4, %s587
        %p589 = pneg %p165
        %p590 = pneg %p162
        %p591 = scmp.lt.s32.totalorder %s33, 1
        %s592 = scalar_select %p591, %s33, 1
        %s593 = smul.addr %s592, 4
        %s594 = smul.addr %s593, 4
        %s595 = scalar_lea.vmem %s5, %s594
        %p596 = pneg %p191
        %p597 = pneg %p188
        %p598 = scmp.lt.s32.totalorder %s33, 1
        %s599 = scalar_select %p598, %s33, 1
        %s600 = smul.addr %s599, 8
        %s601 = smul.addr %s600, 4
        %s602 = scalar_lea.vmem %s6, %s601
        %p603 = pneg %p217
        %p604 = pneg %p214
        %p605 = scmp.lt.s32.totalorder %s33, 1
        %s606 = scalar_select %p605, %s33, 1
        %s607 = smul.addr %s606, 8
        %s608 = smul.addr %s607, 4
        %s609 = scalar_lea.vmem %s7, %s608
        %p610 = pneg %p243
        %p611 = pneg %p240
        %p612 = scmp.lt.s32.totalorder %s33, 1
        %s613 = scalar_select %p612, %s33, 1
        %s614 = smul.addr %s613, 8
        %s615 = smul.addr %s614, 4
        %s616 = scalar_lea.vmem %s8, %s615
        %p617 = pneg %p269
        %p618 = pneg %p266
        %p619 = scmp.lt.s32.totalorder %s33, 1
        %s620 = scalar_select %p619, %s33, 1
        %s621 = smul.addr %s620, 4
        %s622 = smul.addr %s621, 4
        %s623 = scalar_lea.vmem %s9, %s622
        %p624 = pneg %p295
        %p625 = pneg %p292
        %p626 = scmp.lt.s32.totalorder %s33, 1
        %s627 = scalar_select %p626, %s33, 1
        %s628 = smul.addr %s627, 4
        %s629 = smul.addr %s628, 4
        %s630 = scalar_lea.vmem %s10, %s629
        %p631 = pneg %p321
        %p632 = pneg %p318
        %p633 = scmp.lt.s32.totalorder %s33, 1
        %s634 = scalar_select %p633, %s33, 1
        %s635 = scalar_lea.vmem %s11, %s634
        %p636 = pneg %p347
        %p637 = pneg %p344
        %p638 = scmp.lt.s32.totalorder %s33, 1
        %s639 = scalar_select %p638, %s33, 1
        %s640 = smul.addr %s639, 8
        %s641 = smul.addr %s640, 4
        %s642 = scalar_lea.vmem %s12, %s641
        %p643 = pneg %p373
        %p644 = pneg %p370
        %p645 = scmp.lt.s32.totalorder %s33, 1
        %s646 = scalar_select %p645, %s33, 1
        %s647 = smul.addr %s646, 8
        %s648 = scalar_lea.vmem %s13, %s647
        %p649 = pneg %p399
        %p650 = pneg %p396
        %p651 = pneg %p425
        %p652 = pneg %p422
        %s653 = sand.u32 %s412, 1
        %s654 = scalar_lea.sflag [#allocation3], %s653
        %s655 = sand.u32 %s412, 1
        %s656 = smul.addr %s655, 8
        %s657 = scalar_lea.vmem [#allocation2], %s656
        %p658 = scmp.lt.s32.totalorder %s32, 1
        %s659 = scalar_select %p658, %s32, 1
        %s660 = smul.addr %s659, 8
        %s661 = scalar_lea.vmem %s0, %s660
        %p662 = scmp.lt.s32.totalorder %s32, 1
        %s663 = scalar_select %p662, %s32, 1
        %s664 = smul.addr %s663, 4
        %s665 = scalar_lea.vmem %s1, %s664
        %p666 = scmp.lt.s32.totalorder %s33, 1
        %s667 = scalar_select %p666, %s33, 1
        %s668 = smul.addr %s667, 8
        %s669 = smul.addr %s668, 4
        %s670 = scalar_lea.vmem %s2, %s669
        %p671 = scmp.lt.s32.totalorder %s33, 1
        %s672 = scalar_select %p671, %s33, 1
        %s673 = smul.addr %s672, 8
        %s674 = smul.addr %s673, 4
        %s675 = scalar_lea.vmem %s3, %s674
        %p676 = scmp.lt.s32.totalorder %s33, 1
        %s677 = scalar_select %p676, %s33, 1
        %s678 = smul.addr %s677, 8
        %s679 = smul.addr %s678, 4
        %s680 = scalar_lea.vmem %s4, %s679
        %p681 = scmp.lt.s32.totalorder %s33, 1
        %s682 = scalar_select %p681, %s33, 1
        %s683 = smul.addr %s682, 4
        %s684 = smul.addr %s683, 4
        %s685 = scalar_lea.vmem %s5, %s684
        %p686 = scmp.lt.s32.totalorder %s33, 1
        %s687 = scalar_select %p686, %s33, 1
        %s688 = smul.addr %s687, 8
        %s689 = smul.addr %s688, 4
        %s690 = scalar_lea.vmem %s6, %s689
        %p691 = scmp.lt.s32.totalorder %s33, 1
        %s692 = scalar_select %p691, %s33, 1
        %s693 = smul.addr %s692, 8
        %s694 = smul.addr %s693, 4
        %s695 = scalar_lea.vmem %s7, %s694
        %p696 = scmp.lt.s32.totalorder %s33, 1
        %s697 = scalar_select %p696, %s33, 1
        %s698 = smul.addr %s697, 8
        %s699 = smul.addr %s698, 4
        %s700 = scalar_lea.vmem %s8, %s699
        %p701 = scmp.lt.s32.totalorder %s33, 1
        %s702 = scalar_select %p701, %s33, 1
        %s703 = smul.addr %s702, 4
        %s704 = smul.addr %s703, 4
        %s705 = scalar_lea.vmem %s9, %s704
        %p706 = scmp.lt.s32.totalorder %s33, 1
        %s707 = scalar_select %p706, %s33, 1
        %s708 = smul.addr %s707, 4
        %s709 = smul.addr %s708, 4
        %s710 = scalar_lea.vmem %s10, %s709
        %p711 = scmp.lt.s32.totalorder %s33, 1
        %s712 = scalar_select %p711, %s33, 1
        %s713 = scalar_lea.vmem %s11, %s712
        %p714 = scmp.lt.s32.totalorder %s33, 1
        %s715 = scalar_select %p714, %s33, 1
        %s716 = smul.addr %s715, 8
        %s717 = smul.addr %s716, 4
        %s718 = scalar_lea.vmem %s12, %s717
        %p719 = scmp.lt.s32.totalorder %s33, 1
        %s720 = scalar_select %p719, %s33, 1
        %s721 = smul.addr %s720, 8
        %s722 = scalar_lea.vmem %s13, %s721
        %p724 = scmp.eq.s32.totalorder %s33, 0
        // Predicated region
        $region77: #{decoder_forward.3} parent=75 // pred_check
          %p725 = pneg %p724
        $region78: #{decoder_forward.3} parent=75 // pred_check_branch
          %727 = sbr.rel (%p725) target = $region80
        $region79: #{decoder_forward.3} parent=75 // pred_region
          %v728 = vld [vmem:[%s661] sm:$0xff]
          %vm729 = vcmask 261120
          %730 = vst.msk [vmem:[%s657] sm:$0xff] %vm729, %v728
        $region80: #{decoder_forward.3} parent=75 // pred_fallthru
          _
        %v731 = vlaneseq
        %v732 = vshrl.u32 %v731, 7
        %v733 = vlaneseq
        %v734 = vand.u32 %v733, 127
        %vm735 = vcmp.gt.s32.totalorder %v734, %v732
        %v736 = vld [vmem:[%s722] sm:$0xff]
        %v737 = vld [vmem:[%s657] sm:$0xff]
        %v738 = vpack.c.bf16 %v737, %v737
        %v739 = vld [vmem:[%s670] sm:$0xf]
        %v740 = vld [vmem:[%s670 + $0x4] sm:$0xf]
        %v741 = vld [vmem:[%s670 + $0x8] sm:$0xf]
        %v742 = vld [vmem:[%s670 + $0xc] sm:$0xf]
        %v747 = vunpack.c.l.b16 %v739
        %v748 = vunpack.c.l.b16 %v740
        %v749 = vunpack.c.l.b16 %v741
        %v750 = vunpack.c.l.b16 %v742
        %v751 = vpack.c.b16 %v748, %v747
        %v752 = vpack.c.b16 %v750, %v749
        %vm755 = vcmask 261120
        %v757 = vsel %vm755, %v738, 0
        %759 = vmatpush.bf16.msra.mxu0 0
        %760 = vmatpush.bf16.msra.mxu0 0
        %761 = vmatpush.bf16.msra.mxu0 0
        %762 = vmatpush.bf16.msra.mxu0 0
        %763 = vmatpush.bf16.msra.mxu0 0
        %764 = vmatpush.bf16.msra.mxu0 0
        %765 = vmatpush.bf16.msra.mxu0 %v752
        %766 = vmatpush.bf16.msra.mxu0 %v751
        %767 = vmatmul.bf16.gmra.mxu0 %v757
        %v768 = vpop.f32.mrf.mxu0
        %v769 = vadd.f32 0.0, %v768
        %v770 = vpop.f32.mrf.mxu0
        %771 = vdwg.mxu0
        %v772 = vld [vmem:[%s675] sm:$0xf]
        %v773 = vld [vmem:[%s675 + $0x4] sm:$0xf]
        %v774 = vld [vmem:[%s675 + $0x8] sm:$0xf]
        %v775 = vld [vmem:[%s675 + $0xc] sm:$0xf]
        %v780 = vunpack.c.l.b16 %v772
        %v781 = vunpack.c.l.b16 %v773
        %v782 = vunpack.c.l.b16 %v774
        %v783 = vunpack.c.l.b16 %v775
        %v784 = vpack.c.b16 %v781, %v780
        %v785 = vpack.c.b16 %v783, %v782
        %788 = vmatpush.bf16.msra.mxu0 0
        %789 = vmatpush.bf16.msra.mxu0 0
        %790 = vmatpush.bf16.msra.mxu0 0
        %791 = vmatpush.bf16.msra.mxu0 0
        %792 = vmatpush.bf16.msra.mxu0 0
        %793 = vmatpush.bf16.msra.mxu0 0
        %794 = vmatpush.bf16.msra.mxu0 %v785
        %795 = vmatpush.bf16.msra.mxu0 %v784
        %796 = vmatmul.bf16.gmra.mxu0 %v757
        %v797 = vpop.f32.mrf.mxu0
        %v798 = vadd.f32 0.0, %v797
        %v799 = vpop.f32.mrf.mxu0
        %800 = vdwg.mxu0
        %v801 = vld [vmem:[%s680] sm:$0xf]
        %v802 = vld [vmem:[%s680 + $0x4] sm:$0xf]
        %v803 = vld [vmem:[%s680 + $0x8] sm:$0xf]
        %v804 = vld [vmem:[%s680 + $0xc] sm:$0xf]
        %v809 = vunpack.c.l.b16 %v801
        %v810 = vunpack.c.l.b16 %v802
        %v811 = vunpack.c.l.b16 %v803
        %v812 = vunpack.c.l.b16 %v804
        %v813 = vpack.c.b16 %v810, %v809
        %v814 = vpack.c.b16 %v812, %v811
        %817 = vmatpush.bf16.msra.mxu0 0
        %818 = vmatpush.bf16.msra.mxu0 0
        %819 = vmatpush.bf16.msra.mxu0 0
        %820 = vmatpush.bf16.msra.mxu0 0
        %821 = vmatpush.bf16.msra.mxu0 0
        %822 = vmatpush.bf16.msra.mxu0 0
        %823 = vmatpush.bf16.msra.mxu0 %v814
        %824 = vmatpush.bf16.msra.mxu0 %v813
        %825 = vmatmul.bf16.gmra.mxu0 %v757
        %v826 = vpop.f32.mrf.mxu0
        %v827 = vadd.f32 0.0, %v826
        %v828 = vpop.f32.mrf.mxu0
        %829 = vdwg.mxu0
        %v830 = vmul.f32 %v769, 0.25
        %v831 = vpack.c.bf16 %v830, %v830
        %v832 = vpack.c.bf16 %v798, %v798
        %v833 = vpack.c.bf16 %v827, %v827
        %vm834 = vcmask 130048
        %v836 = vsel %vm834, %v831, 0
        %v839 = vsel %vm834, %v832, 0
        %841 = vmatpush.bf16.xpose.msra.mxu0 0
        %842 = vmatpush.bf16.xpose.msra.mxu0 0
        %843 = vmatpush.bf16.xpose.msra.mxu0 0
        %844 = vmatpush.bf16.xpose.msra.mxu0 0
        %845 = vmatpush.bf16.xpose.msra.mxu0 0
        %846 = vmatpush.bf16.xpose.msra.mxu0 0
        %847 = vmatpush.bf16.xpose.msra.mxu0 0
        %848 = vmatpush.bf16.xpose.msra.mxu0 %v839
        %849 = vmatmul.bf16.gmra.mxu0 %v836
        %v850 = vpop.f32.mrf.mxu0
        %v851 = vadd.f32 0.0, %v850
        %v852 = vpop.f32.mrf.mxu0
        %853 = vdwg.mxu0
        %v854 = vsel %vm735, -1e+09, %v851
        %vm855 = vcmask 64512
        %v856 = vsel %vm855, %v854, -inf
        %857 = vmax.xlane.f32.xlu0 %v856
        %v858 = vpop.xlane.xlu0 %857
        %v859 = vsub.f32 %v854, %v858
        %v860 = vmul.f32 %v859, 1.442695
        %v861 = vpow.pop %v860
        %v862 = vsel %vm855, %v861, 0.0
        %863 = vadd.xlane.f32.xlu0 %v862
        %v864 = vpop.xlane.xlu0 %863
        %v865 = vrcp.pop %v864
        %v866 = vmul.f32 %v861, %v865
        %v867 = vpack.c.bf16 %v866, %v866
        %v869 = vsel %vm855, %v867, 0
        %vm871 = vcmask 1043456
        %v873 = vsel %vm871, %v833, 0
        %875 = vmatpush.bf16.msra.mxu0 0
        %876 = vmatpush.bf16.msra.mxu0 0
        %877 = vmatpush.bf16.msra.mxu0 0
        %878 = vmatpush.bf16.msra.mxu0 0
        %879 = vmatpush.bf16.msra.mxu0 0
        %880 = vmatpush.bf16.msra.mxu0 0
        %881 = vmatpush.bf16.msra.mxu0 0
        %882 = vmatpush.bf16.msra.mxu0 %v873
        %883 = vmatmul.bf16.gmra.mxu0 %v869
        %v884 = vpop.f32.mrf.mxu0
        %v885 = vadd.f32 0.0, %v884
        %v886 = vpop.f32.mrf.mxu0
        %887 = vdwg.mxu0
        %v888 = vpack.c.bf16 %v885, %v885
        %v889 = vld [vmem:[%s685] sm:$0xf]
        %v890 = vld [vmem:[%s685 + $0x4] sm:$0xf]
        %s891 = scalar_lea.vmem %s670, 16
        %v892 = vld [vmem:[%s891] sm:$0xf]
        %v893 = vld [vmem:[%s891 + $0x4] sm:$0xf]
        %v894 = vld [vmem:[%s891 + $0x8] sm:$0xf]
        %v895 = vld [vmem:[%s891 + $0xc] sm:$0xf]
        %v900 = vunpack.c.l.b16 %v892
        %v901 = vunpack.c.l.b16 %v893
        %v902 = vunpack.c.l.b16 %v894
        %v903 = vunpack.c.l.b16 %v895
        %v904 = vpack.c.b16 %v901, %v900
        %v905 = vpack.c.b16 %v903, %v902
        %908 = vmatpush.bf16.msra.mxu0 0
        %909 = vmatpush.bf16.msra.mxu0 0
        %910 = vmatpush.bf16.msra.mxu0 0
        %911 = vmatpush.bf16.msra.mxu0 0
        %912 = vmatpush.bf16.msra.mxu0 0
        %913 = vmatpush.bf16.msra.mxu0 0
        %914 = vmatpush.bf16.msra.mxu0 %v905
        %915 = vmatpush.bf16.msra.mxu0 %v904
        %916 = vmatmul.bf16.gmra.mxu0 %v757
        %v917 = vpop.f32.mrf.mxu0
        %v918 = vadd.f32 0.0, %v917
        %v919 = vpop.f32.mrf.mxu0
        %920 = vdwg.mxu0
        %s921 = scalar_lea.vmem %s675, 16
        %v922 = vld [vmem:[%s921] sm:$0xf]
        %v923 = vld [vmem:[%s921 + $0x4] sm:$0xf]
        %v924 = vld [vmem:[%s921 + $0x8] sm:$0xf]
        %v925 = vld [vmem:[%s921 + $0xc] sm:$0xf]
        %v930 = vunpack.c.l.b16 %v922
        %v931 = vunpack.c.l.b16 %v923
        %v932 = vunpack.c.l.b16 %v924
        %v933 = vunpack.c.l.b16 %v925
        %v934 = vpack.c.b16 %v931, %v930
        %v935 = vpack.c.b16 %v933, %v932
        %938 = vmatpush.bf16.msra.mxu0 0
        %939 = vmatpush.bf16.msra.mxu0 0
        %940 = vmatpush.bf16.msra.mxu0 0
        %941 = vmatpush.bf16.msra.mxu0 0
        %942 = vmatpush.bf16.msra.mxu0 0
        %943 = vmatpush.bf16.msra.mxu0 0
        %944 = vmatpush.bf16.msra.mxu0 %v935
        %945 = vmatpush.bf16.msra.mxu0 %v934
        %946 = vmatmul.bf16.gmra.mxu0 %v757
        %v947 = vpop.f32.mrf.mxu0
        %v948 = vadd.f32 0.0, %v947
        %v949 = vpop.f32.mrf.mxu0
        %950 = vdwg.mxu0
        %s951 = scalar_lea.vmem %s680, 16
        %v952 = vld [vmem:[%s951] sm:$0xf]
        %v953 = vld [vmem:[%s951 + $0x4] sm:$0xf]
        %v954 = vld [vmem:[%s951 + $0x8] sm:$0xf]
        %v955 = vld [vmem:[%s951 + $0xc] sm:$0xf]
        %v960 = vunpack.c.l.b16 %v952
        %v961 = vunpack.c.l.b16 %v953
        %v962 = vunpack.c.l.b16 %v954
        %v963 = vunpack.c.l.b16 %v955
        %v964 = vpack.c.b16 %v961, %v960
        %v965 = vpack.c.b16 %v963, %v962
        %968 = vmatpush.bf16.msra.mxu0 0
        %969 = vmatpush.bf16.msra.mxu0 0
        %970 = vmatpush.bf16.msra.mxu0 0
        %971 = vmatpush.bf16.msra.mxu0 0
        %972 = vmatpush.bf16.msra.mxu0 0
        %973 = vmatpush.bf16.msra.mxu0 0
        %974 = vmatpush.bf16.msra.mxu0 %v965
        %975 = vmatpush.bf16.msra.mxu0 %v964
        %976 = vmatmul.bf16.gmra.mxu0 %v757
        %v977 = vpop.f32.mrf.mxu0
        %v978 = vadd.f32 0.0, %v977
        %v979 = vpop.f32.mrf.mxu0
        %980 = vdwg.mxu0
        %v981 = vmul.f32 %v918, 0.25
        %v982 = vpack.c.bf16 %v981, %v981
        %v983 = vpack.c.bf16 %v948, %v948
        %v984 = vpack.c.bf16 %v978, %v978
        %v986 = vsel %vm834, %v982, 0
        %v989 = vsel %vm834, %v983, 0
        %991 = vmatpush.bf16.xpose.msra.mxu0 0
        %992 = vmatpush.bf16.xpose.msra.mxu0 0
        %993 = vmatpush.bf16.xpose.msra.mxu0 0
        %994 = vmatpush.bf16.xpose.msra.mxu0 0
        %995 = vmatpush.bf16.xpose.msra.mxu0 0
        %996 = vmatpush.bf16.xpose.msra.mxu0 0
        %997 = vmatpush.bf16.xpose.msra.mxu0 0
        %998 = vmatpush.bf16.xpose.msra.mxu0 %v989
        %999 = vmatmul.bf16.gmra.mxu0 %v986
        %v1000 = vpop.f32.mrf.mxu0
        %v1001 = vadd.f32 0.0, %v1000
        %v1002 = vpop.f32.mrf.mxu0
        %1003 = vdwg.mxu0
        %v1004 = vsel %vm735, -1e+09, %v1001
        %v1005 = vsel %vm855, %v1004, -inf
        %1006 = vmax.xlane.f32.xlu0 %v1005
        %v1007 = vpop.xlane.xlu0 %1006
        %v1008 = vsub.f32 %v1004, %v1007
        %v1009 = vmul.f32 %v1008, 1.442695
        %v1010 = vpow.pop %v1009
        %v1011 = vsel %vm855, %v1010, 0.0
        %1012 = vadd.xlane.f32.xlu0 %v1011
        %v1013 = vpop.xlane.xlu0 %1012
        %v1014 = vrcp.pop %v1013
        %v1015 = vmul.f32 %v1010, %v1014
        %v1016 = vpack.c.bf16 %v1015, %v1015
        %v1018 = vsel %vm855, %v1016, 0
        %v1021 = vsel %vm871, %v984, 0
        %1023 = vmatpush.bf16.msra.mxu0 0
        %1024 = vmatpush.bf16.msra.mxu0 0
        %1025 = vmatpush.bf16.msra.mxu0 0
        %1026 = vmatpush.bf16.msra.mxu0 0
        %1027 = vmatpush.bf16.msra.mxu0 0
        %1028 = vmatpush.bf16.msra.mxu0 0
        %1029 = vmatpush.bf16.msra.mxu0 0
        %1030 = vmatpush.bf16.msra.mxu0 %v1021
        %1031 = vmatmul.bf16.gmra.mxu0 %v1018
        %v1032 = vpop.f32.mrf.mxu0
        %v1033 = vadd.f32 0.0, %v1032
        %v1034 = vpop.f32.mrf.mxu0
        %1035 = vdwg.mxu0
        %v1036 = vpack.c.bf16 %v1033, %v1033
        %s1037 = scalar_lea.vmem %s685, 8
        %v1038 = vld [vmem:[%s1037] sm:$0xf]
        %v1039 = vld [vmem:[%s1037 + $0x4] sm:$0xf]
        %v1042 = vunpack.c.l.b16 %v1038
        %v1043 = vunpack.c.l.b16 %v1039
        %v1044 = vpack.c.b16 %v1043, %v1042
        %v1047 = vsel %vm834, %v1036, 0
        %1049 = vmatpush.bf16.msra.mxu0 0
        %1050 = vmatpush.bf16.msra.mxu0 0
        %1051 = vmatpush.bf16.msra.mxu0 0
        %1052 = vmatpush.bf16.msra.mxu0 0
        %1053 = vmatpush.bf16.msra.mxu0 0
        %1054 = vmatpush.bf16.msra.mxu0 0
        %1055 = vmatpush.bf16.msra.mxu0 0
        %1056 = vmatpush.bf16.msra.mxu0 %v1044
        %1057 = vmatmul.bf16.gmra.mxu0 %v1047
        %v1058 = vpop.f32.mrf.mxu0
        %v1059 = vadd.f32 0.0, %v1058
        %v1060 = vpop.f32.mrf.mxu0
        %1061 = vdwg.mxu0
        %v1064 = vunpack.c.l.b16 %v889
        %v1065 = vunpack.c.l.b16 %v890
        %v1066 = vpack.c.b16 %v1065, %v1064
        %v1069 = vsel %vm834, %v888, 0
        %1071 = vmatpush.bf16.msra.mxu0 0
        %1072 = vmatpush.bf16.msra.mxu0 0
        %1073 = vmatpush.bf16.msra.mxu0 0
        %1074 = vmatpush.bf16.msra.mxu0 0
        %1075 = vmatpush.bf16.msra.mxu0 0
        %1076 = vmatpush.bf16.msra.mxu0 0
        %1077 = vmatpush.bf16.msra.mxu0 0
        %1078 = vmatpush.bf16.msra.mxu0 %v1066
        %1079 = vmatmul.bf16.gmra.mxu0 %v1069
        %v1080 = vpop.f32.mrf.mxu0
        %v1081 = vadd.f32 %v1059, %v1080
        %v1082 = vpop.f32.mrf.mxu0
        %1083 = vdwg.mxu0
        %v1084 = vadd.f32 %v1081, %v737
        %v1085 = vsel %vm755, %v1084, 0.0
        %1086 = vadd.xlane.f32.xlu0 %v1085
        %v1087 = vpop.xlane.xlu0 %1086
        %v1088 = vrcp.pop 32.0
        %v1089 = vmul.f32 32.0, %v1088
        %v1090 = vsub.f32 1.0, %v1089
        %v1091 = vmul.f32 %v1088, %v1090
        %v1092 = vadd.f32 %v1088, %v1091
        %vm1093 = vweird.f32 %v1088
        %v1094 = vsel %vm1093, %v1088, %v1092
        %v1095 = vmul.f32 %v1087, %v1094
        %v1096 = vsub.f32 %v1084, %v1095
        %v1097 = vmul.f32 %v1096, %v1096
        %v1098 = vsel %vm755, %v1097, 0.0
        %1099 = vadd.xlane.f32.xlu0 %v1098
        %v1100 = vpop.xlane.xlu0 %1099
        %v1101 = vmul.f32 %v1100, %v1094
        %v1102 = vadd.f32 %v1101, 1e-06
        %v1103 = vrsqrt.pop %v1102
        %v1104 = vmul.f32 %v1103, %v1102
        %v1105 = vmul.f32 %v1104, %v1103
        %v1106 = vmul.f32 0.5, %v1105
        %v1107 = vsub.f32 1.5, %v1106
        %v1108 = vmul.f32 %v1103, %v1107
        %vm1109 = vweird.f32 %v1102
        %vm1110 = vweird.f32 %v1103
        %vm1111 = vmor %vm1109, %vm1110
        %v1112 = vsel %vm1111, %v1103, %v1108
        %v1113 = vmul.f32 %v1096, %v1112
        %v1114 = vperm.slane %v736, 0
        %v1115 = vmul.f32 %v1113, %v1114
        %v1116 = vperm.slane %v736, 1
        %v1117 = vadd.f32 %v1115, %v1116
        %v1118 = vpack.c.bf16 %v1117, %v1117
        %v1119 = vld [vmem:[%s665] sm:$0xf]
        %v1120 = vld [vmem:[%s690] sm:$0xf]
        %v1121 = vld [vmem:[%s690 + $0x4] sm:$0xf]
        %v1122 = vld [vmem:[%s690 + $0x8] sm:$0xf]
        %v1123 = vld [vmem:[%s690 + $0xc] sm:$0xf]
        %v1128 = vunpack.c.l.b16 %v1120
        %v1129 = vunpack.c.l.b16 %v1121
        %v1130 = vunpack.c.l.b16 %v1122
        %v1131 = vunpack.c.l.b16 %v1123
        %v1132 = vpack.c.b16 %v1129, %v1128
        %v1133 = vpack.c.b16 %v1131, %v1130
        %v1137 = vsel %vm755, %v1118, 0
        %1139 = vmatpush.bf16.msra.mxu0 0
        %1140 = vmatpush.bf16.msra.mxu0 0
        %1141 = vmatpush.bf16.msra.mxu0 0
        %1142 = vmatpush.bf16.msra.mxu0 0
        %1143 = vmatpush.bf16.msra.mxu0 0
        %1144 = vmatpush.bf16.msra.mxu0 0
        %1145 = vmatpush.bf16.msra.mxu0 %v1133
        %1146 = vmatpush.bf16.msra.mxu0 %v1132
        %1147 = vmatmul.bf16.gmra.mxu0 %v1137
        %v1148 = vpop.f32.mrf.mxu0
        %v1149 = vadd.f32 0.0, %v1148
        %v1150 = vpop.f32.mrf.mxu0
        %1151 = vdwg.mxu0
        %v1152 = vld [vmem:[%s695] sm:$0xf]
        %v1153 = vld [vmem:[%s695 + $0x4] sm:$0xf]
        %v1154 = vld [vmem:[%s695 + $0x8] sm:$0xf]
        %v1155 = vld [vmem:[%s695 + $0xc] sm:$0xf]
        %v1160 = vunpack.c.l.b16 %v1152
        %v1161 = vunpack.c.l.b16 %v1153
        %v1162 = vunpack.c.l.b16 %v1154
        %v1163 = vunpack.c.l.b16 %v1155
        %v1164 = vpack.c.b16 %v1161, %v1160
        %v1165 = vpack.c.b16 %v1163, %v1162
        %v1169 = vsel %vm755, %v1119, 0
        %1171 = vmatpush.bf16.msra.mxu0 0
        %1172 = vmatpush.bf16.msra.mxu0 0
        %1173 = vmatpush.bf16.msra.mxu0 0
        %1174 = vmatpush.bf16.msra.mxu0 0
        %1175 = vmatpush.bf16.msra.mxu0 0
        %1176 = vmatpush.bf16.msra.mxu0 0
        %1177 = vmatpush.bf16.msra.mxu0 %v1165
        %1178 = vmatpush.bf16.msra.mxu0 %v1164
        %1179 = vmatmul.bf16.gmra.mxu0 %v1169
        %v1180 = vpop.f32.mrf.mxu0
        %v1181 = vadd.f32 0.0, %v1180
        %v1182 = vpop.f32.mrf.mxu0
        %1183 = vdwg.mxu0
        %v1184 = vld [vmem:[%s700] sm:$0xf]
        %v1185 = vld [vmem:[%s700 + $0x4] sm:$0xf]
        %v1186 = vld [vmem:[%s700 + $0x8] sm:$0xf]
        %v1187 = vld [vmem:[%s700 + $0xc] sm:$0xf]
        %v1192 = vunpack.c.l.b16 %v1184
        %v1193 = vunpack.c.l.b16 %v1185
        %v1194 = vunpack.c.l.b16 %v1186
        %v1195 = vunpack.c.l.b16 %v1187
        %v1196 = vpack.c.b16 %v1193, %v1192
        %v1197 = vpack.c.b16 %v1195, %v1194
        %1200 = vmatpush.bf16.msra.mxu0 0
        %1201 = vmatpush.bf16.msra.mxu0 0
        %1202 = vmatpush.bf16.msra.mxu0 0
        %1203 = vmatpush.bf16.msra.mxu0 0
        %1204 = vmatpush.bf16.msra.mxu0 0
        %1205 = vmatpush.bf16.msra.mxu0 0
        %1206 = vmatpush.bf16.msra.mxu0 %v1197
        %1207 = vmatpush.bf16.msra.mxu0 %v1196
        %1208 = vmatmul.bf16.gmra.mxu0 %v1169
        %v1209 = vpop.f32.mrf.mxu0
        %v1210 = vadd.f32 0.0, %v1209
        %v1211 = vpop.f32.mrf.mxu0
        %1212 = vdwg.mxu0
        %v1213 = vmul.f32 %v1149, 0.25
        %v1214 = vpack.c.bf16 %v1213, %v1213
        %v1215 = vpack.c.bf16 %v1181, %v1181
        %v1216 = vpack.c.bf16 %v1210, %v1210
        %v1218 = vsel %vm834, %v1214, 0
        %v1221 = vsel %vm834, %v1215, 0
        %1223 = vmatpush.bf16.xpose.msra.mxu0 0
        %1224 = vmatpush.bf16.xpose.msra.mxu0 0
        %1225 = vmatpush.bf16.xpose.msra.mxu0 0
        %1226 = vmatpush.bf16.xpose.msra.mxu0 0
        %1227 = vmatpush.bf16.xpose.msra.mxu0 0
        %1228 = vmatpush.bf16.xpose.msra.mxu0 0
        %1229 = vmatpush.bf16.xpose.msra.mxu0 0
        %1230 = vmatpush.bf16.xpose.msra.mxu0 %v1221
        %1231 = vmatmul.bf16.gmra.mxu0 %v1218
        %v1232 = vpop.f32.mrf.mxu0
        %v1233 = vadd.f32 0.0, %v1232
        %v1234 = vpop.f32.mrf.mxu0
        %1235 = vdwg.mxu0
        %v1236 = vsel %vm735, -1e+09, %v1233
        %v1237 = vsel %vm855, %v1236, -inf
        %1238 = vmax.xlane.f32.xlu0 %v1237
        %v1239 = vpop.xlane.xlu0 %1238
        %v1240 = vsub.f32 %v1236, %v1239
        %v1241 = vmul.f32 %v1240, 1.442695
        %v1242 = vpow.pop %v1241
        %v1243 = vsel %vm855, %v1242, 0.0
        %1244 = vadd.xlane.f32.xlu0 %v1243
        %v1245 = vpop.xlane.xlu0 %1244
        %v1246 = vrcp.pop %v1245
        %v1247 = vmul.f32 %v1242, %v1246
        %v1248 = vpack.c.bf16 %v1247, %v1247
        %v1250 = vsel %vm855, %v1248, 0
        %v1253 = vsel %vm871, %v1216, 0
        %1255 = vmatpush.bf16.msra.mxu0 0
        %1256 = vmatpush.bf16.msra.mxu0 0
        %1257 = vmatpush.bf16.msra.mxu0 0
        %1258 = vmatpush.bf16.msra.mxu0 0
        %1259 = vmatpush.bf16.msra.mxu0 0
        %1260 = vmatpush.bf16.msra.mxu0 0
        %1261 = vmatpush.bf16.msra.mxu0 0
        %1262 = vmatpush.bf16.msra.mxu0 %v1253
        %1263 = vmatmul.bf16.gmra.mxu0 %v1250
        %v1264 = vpop.f32.mrf.mxu0
        %v1265 = vadd.f32 0.0, %v1264
        %v1266 = vpop.f32.mrf.mxu0
        %1267 = vdwg.mxu0
        %v1268 = vpack.c.bf16 %v1265, %v1265
        %v1269 = vld [vmem:[%s705] sm:$0xf]
        %v1270 = vld [vmem:[%s705 + $0x4] sm:$0xf]
        %s1271 = scalar_lea.vmem %s690, 16
        %v1272 = vld [vmem:[%s1271] sm:$0xf]
        %v1273 = vld [vmem:[%s1271 + $0x4] sm:$0xf]
        %v1274 = vld [vmem:[%s1271 + $0x8] sm:$0xf]
        %v1275 = vld [vmem:[%s1271 + $0xc] sm:$0xf]
        %v1280 = vunpack.c.l.b16 %v1272
        %v1281 = vunpack.c.l.b16 %v1273
        %v1282 = vunpack.c.l.b16 %v1274
        %v1283 = vunpack.c.l.b16 %v1275
        %v1284 = vpack.c.b16 %v1281, %v1280
        %v1285 = vpack.c.b16 %v1283, %v1282
        %1288 = vmatpush.bf16.msra.mxu0 0
        %1289 = vmatpush.bf16.msra.mxu0 0
        %1290 = vmatpush.bf16.msra.mxu0 0
        %1291 = vmatpush.bf16.msra.mxu0 0
        %1292 = vmatpush.bf16.msra.mxu0 0
        %1293 = vmatpush.bf16.msra.mxu0 0
        %1294 = vmatpush.bf16.msra.mxu0 %v1285
        %1295 = vmatpush.bf16.msra.mxu0 %v1284
        %1296 = vmatmul.bf16.gmra.mxu0 %v1137
        %v1297 = vpop.f32.mrf.mxu0
        %v1298 = vadd.f32 0.0, %v1297
        %v1299 = vpop.f32.mrf.mxu0
        %1300 = vdwg.mxu0
        %s1301 = scalar_lea.vmem %s695, 16
        %v1302 = vld [vmem:[%s1301] sm:$0xf]
        %v1303 = vld [vmem:[%s1301 + $0x4] sm:$0xf]
        %v1304 = vld [vmem:[%s1301 + $0x8] sm:$0xf]
        %v1305 = vld [vmem:[%s1301 + $0xc] sm:$0xf]
        %v1310 = vunpack.c.l.b16 %v1302
        %v1311 = vunpack.c.l.b16 %v1303
        %v1312 = vunpack.c.l.b16 %v1304
        %v1313 = vunpack.c.l.b16 %v1305
        %v1314 = vpack.c.b16 %v1311, %v1310
        %v1315 = vpack.c.b16 %v1313, %v1312
        %1318 = vmatpush.bf16.msra.mxu0 0
        %1319 = vmatpush.bf16.msra.mxu0 0
        %1320 = vmatpush.bf16.msra.mxu0 0
        %1321 = vmatpush.bf16.msra.mxu0 0
        %1322 = vmatpush.bf16.msra.mxu0 0
        %1323 = vmatpush.bf16.msra.mxu0 0
        %1324 = vmatpush.bf16.msra.mxu0 %v1315
        %1325 = vmatpush.bf16.msra.mxu0 %v1314
        %1326 = vmatmul.bf16.gmra.mxu0 %v1169
        %v1327 = vpop.f32.mrf.mxu0
        %v1328 = vadd.f32 0.0, %v1327
        %v1329 = vpop.f32.mrf.mxu0
        %1330 = vdwg.mxu0
        %s1331 = scalar_lea.vmem %s700, 16
        %v1332 = vld [vmem:[%s1331] sm:$0xf]
        %v1333 = vld [vmem:[%s1331 + $0x4] sm:$0xf]
        %v1334 = vld [vmem:[%s1331 + $0x8] sm:$0xf]
        %v1335 = vld [vmem:[%s1331 + $0xc] sm:$0xf]
        %v1340 = vunpack.c.l.b16 %v1332
        %v1341 = vunpack.c.l.b16 %v1333
        %v1342 = vunpack.c.l.b16 %v1334
        %v1343 = vunpack.c.l.b16 %v1335
        %v1344 = vpack.c.b16 %v1341, %v1340
        %v1345 = vpack.c.b16 %v1343, %v1342
        %1348 = vmatpush.bf16.msra.mxu0 0
        %1349 = vmatpush.bf16.msra.mxu0 0
        %1350 = vmatpush.bf16.msra.mxu0 0
        %1351 = vmatpush.bf16.msra.mxu0 0
        %1352 = vmatpush.bf16.msra.mxu0 0
        %1353 = vmatpush.bf16.msra.mxu0 0
        %1354 = vmatpush.bf16.msra.mxu0 %v1345
        %1355 = vmatpush.bf16.msra.mxu0 %v1344
        %1356 = vmatmul.bf16.gmra.mxu0 %v1169
        %v1357 = vpop.f32.mrf.mxu0
        %v1358 = vadd.f32 0.0, %v1357
        %v1359 = vpop.f32.mrf.mxu0
        %1360 = vdwg.mxu0
        %v1361 = vmul.f32 %v1298, 0.25
        %v1362 = vpack.c.bf16 %v1361, %v1361
        %v1363 = vpack.c.bf16 %v1328, %v1328
        %v1364 = vpack.c.bf16 %v1358, %v1358
        %v1366 = vsel %vm834, %v1362, 0
        %v1369 = vsel %vm834, %v1363, 0
        %1371 = vmatpush.bf16.xpose.msra.mxu0 0
        %1372 = vmatpush.bf16.xpose.msra.mxu0 0
        %1373 = vmatpush.bf16.xpose.msra.mxu0 0
        %1374 = vmatpush.bf16.xpose.msra.mxu0 0
        %1375 = vmatpush.bf16.xpose.msra.mxu0 0
        %1376 = vmatpush.bf16.xpose.msra.mxu0 0
        %1377 = vmatpush.bf16.xpose.msra.mxu0 0
        %1378 = vmatpush.bf16.xpose.msra.mxu0 %v1369
        %1379 = vmatmul.bf16.gmra.mxu0 %v1366
        %v1380 = vpop.f32.mrf.mxu0
        %v1381 = vadd.f32 0.0, %v1380
        %v1382 = vpop.f32.mrf.mxu0
        %1383 = vdwg.mxu0
        %v1384 = vsel %vm735, -1e+09, %v1381
        %v1385 = vsel %vm855, %v1384, -inf
        %1386 = vmax.xlane.f32.xlu0 %v1385
        %v1387 = vpop.xlane.xlu0 %1386
        %v1388 = vsub.f32 %v1384, %v1387
        %v1389 = vmul.f32 %v1388, 1.442695
        %v1390 = vpow.pop %v1389
        %v1391 = vsel %vm855, %v1390, 0.0
        %1392 = vadd.xlane.f32.xlu0 %v1391
        %v1393 = vpop.xlane.xlu0 %1392
        %v1394 = vrcp.pop %v1393
        %v1395 = vmul.f32 %v1390, %v1394
        %v1396 = vpack.c.bf16 %v1395, %v1395
        %v1398 = vsel %vm855, %v1396, 0
        %v1401 = vsel %vm871, %v1364, 0
        %1403 = vmatpush.bf16.msra.mxu0 0
        %1404 = vmatpush.bf16.msra.mxu0 0
        %1405 = vmatpush.bf16.msra.mxu0 0
        %1406 = vmatpush.bf16.msra.mxu0 0
        %1407 = vmatpush.bf16.msra.mxu0 0
        %1408 = vmatpush.bf16.msra.mxu0 0
        %1409 = vmatpush.bf16.msra.mxu0 0
        %1410 = vmatpush.bf16.msra.mxu0 %v1401
        %1411 = vmatmul.bf16.gmra.mxu0 %v1398
        %v1412 = vpop.f32.mrf.mxu0
        %v1413 = vadd.f32 0.0, %v1412
        %v1414 = vpop.f32.mrf.mxu0
        %1415 = vdwg.mxu0
        %v1416 = vpack.c.bf16 %v1413, %v1413
        %s1417 = scalar_lea.vmem %s705, 8
        %v1418 = vld [vmem:[%s1417] sm:$0xf]
        %v1419 = vld [vmem:[%s1417 + $0x4] sm:$0xf]
        %v1422 = vunpack.c.l.b16 %v1418
        %v1423 = vunpack.c.l.b16 %v1419
        %v1424 = vpack.c.b16 %v1423, %v1422
        %v1427 = vsel %vm834, %v1416, 0
        %1429 = vmatpush.bf16.msra.mxu0 0
        %1430 = vmatpush.bf16.msra.mxu0 0
        %1431 = vmatpush.bf16.msra.mxu0 0
        %1432 = vmatpush.bf16.msra.mxu0 0
        %1433 = vmatpush.bf16.msra.mxu0 0
        %1434 = vmatpush.bf16.msra.mxu0 0
        %1435 = vmatpush.bf16.msra.mxu0 0
        %1436 = vmatpush.bf16.msra.mxu0 %v1424
        %1437 = vmatmul.bf16.gmra.mxu0 %v1427
        %v1438 = vpop.f32.mrf.mxu0
        %v1439 = vadd.f32 0.0, %v1438
        %v1440 = vpop.f32.mrf.mxu0
        %1441 = vdwg.mxu0
        %v1444 = vunpack.c.l.b16 %v1269
        %v1445 = vunpack.c.l.b16 %v1270
        %v1446 = vpack.c.b16 %v1445, %v1444
        %v1449 = vsel %vm834, %v1268, 0
        %1451 = vmatpush.bf16.msra.mxu0 0
        %1452 = vmatpush.bf16.msra.mxu0 0
        %1453 = vmatpush.bf16.msra.mxu0 0
        %1454 = vmatpush.bf16.msra.mxu0 0
        %1455 = vmatpush.bf16.msra.mxu0 0
        %1456 = vmatpush.bf16.msra.mxu0 0
        %1457 = vmatpush.bf16.msra.mxu0 0
        %1458 = vmatpush.bf16.msra.mxu0 %v1446
        %1459 = vmatmul.bf16.gmra.mxu0 %v1449
        %v1460 = vpop.f32.mrf.mxu0
        %v1461 = vadd.f32 %v1439, %v1460
        %v1462 = vpop.f32.mrf.mxu0
        %1463 = vdwg.mxu0
        %v1464 = vadd.f32 %v1461, %v1117
        %v1465 = vsel %vm755, %v1464, 0.0
        %1466 = vadd.xlane.f32.xlu0 %v1465
        %v1467 = vpop.xlane.xlu0 %1466
        %v1468 = vmul.f32 %v1467, %v1094
        %v1469 = vsub.f32 %v1464, %v1468
        %v1470 = vmul.f32 %v1469, %v1469
        %v1471 = vsel %vm755, %v1470, 0.0
        %1472 = vadd.xlane.f32.xlu0 %v1471
        %v1473 = vpop.xlane.xlu0 %1472
        %v1474 = vmul.f32 %v1473, %v1094
        %v1475 = vadd.f32 %v1474, 1e-06
        %v1476 = vrsqrt.pop %v1475
        %v1477 = vmul.f32 %v1476, %v1475
        %v1478 = vmul.f32 %v1477, %v1476
        %v1479 = vmul.f32 0.5, %v1478
        %v1480 = vsub.f32 1.5, %v1479
        %v1481 = vmul.f32 %v1476, %v1480
        %vm1482 = vweird.f32 %v1475
        %vm1483 = vweird.f32 %v1476
        %vm1484 = vmor %vm1482, %vm1483
        %v1485 = vsel %vm1484, %v1476, %v1481
        %v1486 = vmul.f32 %v1469, %v1485
        %v1487 = vperm.slane %v736, 2
        %v1488 = vmul.f32 %v1486, %v1487
        %v1489 = vperm.slane %v736, 3
        %v1490 = vadd.f32 %v1488, %v1489
        %v1491 = vpack.c.bf16 %v1490, %v1490
        %v1492 = vld [vmem:[%s710] sm:$0xf]
        %v1493 = vld [vmem:[%s710 + $0x4] sm:$0xf]
        %v1494 = vld [vmem:[%s710 + $0x8] sm:$0xf]
        %v1495 = vld [vmem:[%s710 + $0xc] sm:$0xf]
        %v1496 = vld [vmem:[%s713] sm:$0x1]
        %v1498 = vperm.slane %v1496, 0
        %v1504 = vunpack.c.l.b16 %v1492
        %v1505 = vunpack.c.l.b16 %v1493
        %v1506 = vunpack.c.l.b16 %v1494
        %v1507 = vunpack.c.l.b16 %v1495
        %v1508 = vpack.c.b16 %v1505, %v1504
        %v1509 = vpack.c.b16 %v1507, %v1506
        %v1513 = vsel %vm755, %v1491, 0
        %1515 = vmatpush.bf16.msra.mxu0 0
        %1516 = vmatpush.bf16.msra.mxu0 0
        %1517 = vmatpush.bf16.msra.mxu0 0
        %1518 = vmatpush.bf16.msra.mxu0 0
        %1519 = vmatpush.bf16.msra.mxu0 0
        %1520 = vmatpush.bf16.msra.mxu0 0
        %1521 = vmatpush.bf16.msra.mxu0 %v1509
        %1522 = vmatpush.bf16.msra.mxu0 %v1508
        %1523 = vmatmul.bf16.gmra.mxu0 %v1513
        %v1524 = vpop.f32.mrf.mxu0
        %v1525 = vadd.f32 %v1498, %v1524
        %v1526 = vpop.f32.mrf.mxu0
        %1527 = vdwg.mxu0
        %v1528 = vmax.f32 %v1525, 0.0
        %v1529 = vpack.c.bf16 %v1528, %v1528
        %v1530 = vld [vmem:[%s718] sm:$0xf]
        %v1531 = vld [vmem:[%s718 + $0x4] sm:$0xf]
        %v1532 = vld [vmem:[%s718 + $0x8] sm:$0xf]
        %v1533 = vld [vmem:[%s718 + $0xc] sm:$0xf]
        %v1534 = vld [vmem:[%s718 + $0x10] sm:$0xf]
        %v1535 = vld [vmem:[%s718 + $0x14] sm:$0xf]
        %v1536 = vld [vmem:[%s718 + $0x18] sm:$0xf]
        %v1537 = vld [vmem:[%s718 + $0x1c] sm:$0xf]
        %v1538 = vperm.slane %v736, 4
        %v1547 = vunpack.c.l.b16 %v1530
        %v1548 = vunpack.c.l.b16 %v1531
        %v1549 = vunpack.c.l.b16 %v1532
        %v1550 = vunpack.c.l.b16 %v1533
        %v1551 = vunpack.c.l.b16 %v1534
        %v1552 = vunpack.c.l.b16 %v1535
        %v1553 = vunpack.c.l.b16 %v1536
        %v1554 = vunpack.c.l.b16 %v1537
        %v1555 = vpack.c.b16 %v1548, %v1547
        %v1556 = vpack.c.b16 %v1550, %v1549
        %v1557 = vpack.c.b16 %v1552, %v1551
        %v1558 = vpack.c.b16 %v1554, %v1553
        %vm1563 = vcmask 523264
        %v1565 = vsel %vm1563, %v1529, 0
        %1567 = vmatpush.bf16.msra.mxu0 0
        %1568 = vmatpush.bf16.msra.mxu0 0
        %1569 = vmatpush.bf16.msra.mxu0 0
        %1570 = vmatpush.bf16.msra.mxu0 0
        %1571 = vmatpush.bf16.msra.mxu0 %v1558
        %1572 = vmatpush.bf16.msra.mxu0 %v1557
        %1573 = vmatpush.bf16.msra.mxu0 %v1556
        %1574 = vmatpush.bf16.msra.mxu0 %v1555
        %1575 = vmatmul.bf16.gmra.mxu0 %v1565
        %v1576 = vpop.f32.mrf.mxu0
        %v1577 = vadd.f32 %v1538, %v1576
        %v1578 = vpop.f32.mrf.mxu0
        %1579 = vdwg.mxu0
        %v1580 = vadd.f32 %v1577, %v1490
        %v1581 = vsel %vm755, %v1580, 0.0
        %1582 = vadd.xlane.f32.xlu0 %v1581
        %v1583 = vpop.xlane.xlu0 %1582
        %v1584 = vmul.f32 %v1583, %v1094
        %v1585 = vsub.f32 %v1580, %v1584
        %v1586 = vmul.f32 %v1585, %v1585
        %v1587 = vsel %vm755, %v1586, 0.0
        %1588 = vadd.xlane.f32.xlu0 %v1587
        %v1589 = vpop.xlane.xlu0 %1588
        %v1590 = vmul.f32 %v1589, %v1094
        %v1591 = vadd.f32 %v1590, 1e-06
        %v1592 = vrsqrt.pop %v1591
        %v1593 = vmul.f32 %v1592, %v1591
        %v1594 = vmul.f32 %v1593, %v1592
        %v1595 = vmul.f32 0.5, %v1594
        %v1596 = vsub.f32 1.5, %v1595
        %v1597 = vmul.f32 %v1592, %v1596
        %vm1598 = vweird.f32 %v1591
        %vm1599 = vweird.f32 %v1592
        %vm1600 = vmor %vm1598, %vm1599
        %v1601 = vsel %vm1600, %v1592, %v1597
        %v1602 = vmul.f32 %v1585, %v1601
        %v1603 = vperm.slane %v736, 5
        %v1604 = vmul.f32 %v1602, %v1603
        %v1605 = vperm.slane %v736, 6
        %v1606 = vadd.f32 %v1604, %v1605
        %1607 = vst.msk [vmem:[%s657] sm:$0xff] %vm755, %v1606
        %s1608 = sand.u32 %s412, 1
        %s1609 = scalar_lea.sflag [#allocation3], %s1608
        %s1610 = sand.u32 %s412, 1
        %s1611 = smul.addr %s1610, 8
        %s1612 = scalar_lea.vmem [#allocation2], %s1611
        // Predicated region
        $region81: #{decoder_forward.3} parent=75 // pred_check
          %p1613 = pneg %p422
        $region82: #{decoder_forward.3} parent=75 // pred_check_branch
          %1615 = sbr.rel (%p1613) target = $region84
        $region83: #{decoder_forward.3} parent=75 // pred_region
          %1617 = vsyncadd %s1609, 0
          %s1618 = smul.addr %s32, 8
          %s1619 = scalar_lea.hbm %s14, %s1618
          %s1621 = sshll.u32 %s1612, 4
          %s1622 = int_to_ptr.vmem [resolvable:$true] %s1621
          %s1623 = sshll.u32 %s1619, 4
          %s1624 = int_to_ptr.hbm [resolvable:$true] %s1623
          %1626 = dma.vmem_to_hbm [thread:$0]  %s1622, 128, %s1624, %s1609
        $region84: #{decoder_forward.3} parent=75 // pred_fallthru
          _
      $region76: #{decoder_forward.3} parent=5 // pred_fallthru
        _
      %p1627 = scmp.le.s32.totalorder 2, %s23
      // Predicated region
      $region85: #{decoder_forward.3} parent=5 // pred_check
        %p1628 = pneg %p1627
      $region86: #{decoder_forward.3} parent=5 // pred_check_branch
        %1630 = sbr.rel (%p1628) target = $region88
      $region87: #{decoder_forward.3} parent=5 // pred_region
        %s1631 = ssub.s32 %s23, 2
        // Predicated region
        $region89: #{decoder_forward.3} parent=87 // pred_check
          %p1632 = pneg %p428
        $region90: #{decoder_forward.3} parent=87 // pred_check_branch
          %1634 = sbr.rel (%p1632) target = $region92
        $region91: #{decoder_forward.3} parent=87 // pred_region
          %s1635 = sand.u32 %s413, 1
          %s1636 = scalar_lea.sflag [#allocation3], %s1635
          %s1637 = sand.u32 %s413, 1
          %s1638 = smul.addr %s1637, 8
          %s1639 = scalar_lea.vmem [#allocation2], %s1638
          %1641 = dma.done %s1636, 128
        $region92: #{decoder_forward.3} parent=87 // pred_fallthru
          _
      $region88: #{decoder_forward.3} parent=5 // pred_fallthru
        _
    $region6: #{decoder_forward.3} parent=1 // loop_footer
      %s27 = sadd.s32 1, %s23
    $region7: #{decoder_forward.3} parent=1 // loop_footer_branch
      %22 = sbr.rel target = $region3
    $region8: #{decoder_forward.3} parent=1 // loop_exit
      _
    %1642 = vsyncpa [#allocation3], 1
    %s1643 = scalar_lea.sflag [#allocation3], 1
    %1644 = vsyncpa %s1643, 1

</llo_original>
